<compile_context>
chip_gen: v5e
topology: v5e:2x2
jax: 0.10.0
libtpu: 0.0.40
codegen_flags: <defaults>
</compile_context>

<pallas_src>
import jax
import jax.numpy as jnp
from jax.experimental import pallas as pl
from jax.experimental.pallas import tpu as pltpu


def _round_up(n, m):
    return ((n + m - 1) // m) * m


_NEG_BIG = -1e30  # finite "-inf" so masked products never produce NaN


def _masked_logsoftmax_gather(z, idx, n_valid):
    """Fused masked log-softmax + gather along axis 0 (vocab on sublanes).

    z:       [Vp, TB] f32 logits; rows >= n_valid are padding.
    idx:     [1, TB] int32 row index to gather per batch column (< n_valid).
    returns: [1, TB] f32  ==  log_softmax(z[:n_valid], axis=0)[idx, :]
    The padding mask is skipped statically when n_valid == Vp.
    """
    n_rows = z.shape[0]
    row = jax.lax.broadcasted_iota(jnp.int32, z.shape, 0)
    zm = jnp.where(row < n_valid, z, _NEG_BIG) if n_valid < n_rows else z
    m = jnp.max(zm, axis=0, keepdims=True)                               # [1, TB]
    s = jnp.sum(jnp.exp(zm - m), axis=0, keepdims=True)                  # [1, TB]
    z_sel = jnp.sum(jnp.where(row == idx, zm, 0.0), axis=0, keepdims=True)
    return z_sel - m - jnp.log(s)


def _make_kernel(*, tile_b, n_tail, cutoff_values, head_size, head_pad,
                 h_pad, h_off, tail_vocab, compute_dtype):
    cluster_base = cutoff_values[1]  # == cutoffs[0]

    def kernel(counts_ref, x_ref, tgt_ref, wcat_ref, *rest):
        # rest = (w2_0, ..., w2_{n-1}, out_ref, tail_scratch, gidx_scratch)
        w2_refs = rest[:n_tail]
        out_ref = rest[n_tail]
        tail_ref = rest[n_tail + 1]    # VMEM [1, TB] f32
        gidx_ref = rest[n_tail + 2]    # VMEM [1, TB] int32

        b = pl.program_id(0)
        x = x_ref[...]                  # [Dp, TB] compute_dtype (batch on lanes)
        tgt = tgt_ref[...]              # [1, TB] int32

        # ---- ONE fused matmul: head logits + all tail first projections ----
        z_all = jnp.dot(wcat_ref[...], x,
                        preferred_element_type=jnp.float32)  # [head_pad+h_tot, TB]
        head_z = z_all[:head_pad]                             # [head_pad, TB] f32
        # Single hoisted cast of the tail "mid" activations.
        mid_all = z_all[head_pad:].astype(compute_dtype)      # [h_tot, TB]

        # Scratch (persists across grid steps) must be re-initialized per tile.
        tail_ref[...] = jnp.zeros_like(tail_ref)
        gidx_ref[...] = tgt

        for i in range(n_tail):
            lo = cutoff_values[i + 1]
            hi = cutoff_values[i + 2]
            vocab = tail_vocab[i]      # == hi - lo

            # Skip the whole cluster when this batch tile has no rows in it.
            @pl.when(counts_ref[b * n_tail + i] > 0)
            def _(i=i, lo=lo, hi=hi, vocab=vocab):
                in_cluster = (tgt >= lo) & (tgt < hi)              # [1, TB]
                rel = jnp.clip(tgt - lo, 0, vocab - 1)             # [1, TB]
                mid = mid_all[h_off[i]:h_off[i] + h_pad[i], :]     # 128-aligned slice
                logits = jnp.dot(w2_refs[i][...], mid,
                                 preferred_element_type=jnp.float32)  # [Vp_i, TB]
                local = _masked_logsoftmax_gather(logits, rel, vocab)  # [1, TB]
                tail_ref[...] = jnp.where(in_cluster, local, tail_ref[...])
                gidx_ref[...] = jnp.where(in_cluster, cluster_base + i,
                                          gidx_ref[...])

        head_lp = _masked_logsoftmax_gather(head_z, gidx_ref[...], head_size)
        out_ref[...] = tail_ref[...] + head_lp                 # lane-dense [1, TB] store

    return kernel


def prepare_adaptive_softmax_params(w_head, tail_weights, cutoffs, ntokens,
                                    compute_dtype=jnp.bfloat16):
    """One-time padding / casting of the PyTorch-layout ([out, in]) weights.

    No weight transposes: the kernel computes W @ x^T which equals the PyTorch
    x @ W^T (transposed), so the [out, in] layout is already what the MXU needs.
    The head weight and all tail first-projection weights are concatenated into
    one resident matrix so the kernel does a single fused matmul per tile.
    """
    cutoff_values = [0] + list(cutoffs) + [ntokens]
    n_tail = len(cutoff_values) - 2
    assert n_tail >= 1
    head_size = cutoff_values[1] + n_tail
    ninp = w_head.shape[1]

    d_pad = _round_up(ninp, 128)          # lane dim of the resident weight matrices
    head_pad = _round_up(head_size, 128)  # 128 so mid_all slice offsets stay aligned

    h_sizes = [w1.shape[0] for (w1, _) in tail_weights]
    h_pad = [_round_up(h, 128) for h in h_sizes]   # K of the 2nd matmul
    h_off = [0]
    for hp in h_pad[:-1]:
        h_off.append(h_off[-1] + hp)
    h_tot = sum(h_pad)

    wcat = jnp.zeros((head_pad + h_tot, d_pad), compute_dtype)
    wcat = wcat.at[:head_size, :ninp].set(jnp.asarray(w_head, compute_dtype))
    for i, (w1, _) in enumerate(tail_weights):
        r0 = head_pad + h_off[i]
        wcat = wcat.at[r0:r0 + h_sizes[i], :ninp].set(
            jnp.asarray(w1, compute_dtype))

    tail_vocab, w2_pads = [], []
    for i, (_, w2) in enumerate(tail_weights):
        v = w2.shape[0]
        v_pad = _round_up(v, 16)
        w2p = jnp.zeros((v_pad, h_pad[i]), compute_dtype)
        w2p = w2p.at[:v, :h_sizes[i]].set(jnp.asarray(w2, compute_dtype))
        tail_vocab.append(v)
        w2_pads.append(w2p)

    return dict(
        cutoff_values=cutoff_values, n_tail=n_tail, head_size=head_size,
        ninp=ninp, d_pad=d_pad, head_pad=head_pad,
        h_pad=tuple(h_pad), h_off=tuple(h_off), tail_vocab=tuple(tail_vocab),
        compute_dtype=compute_dtype,
        wcat=wcat, w2_pads=tuple(w2_pads),
    )


def _physical_vmem_bytes():
    try:
        return int(pltpu.get_tpu_info().vmem_capacity_bytes)
    except Exception:
        return 64 * 1024 * 1024  # conservative (v7x per-TC)


def _mxu_lane_width():
    try:
        kind = jax.devices()[0].device_kind.lower()
    except Exception:
        return 128
    if ("v6" in kind) or ("v7" in kind) or ("7x" in kind):
        return 256               # 2x256^2 MXU -> fill N with 256
    return 128                   # v5e and older: 128-wide MXU


def _vmem_estimate_bytes(*, tile_b, d_pad, wcat_shape, w2_shapes,
                         compute_dtype, weight_buffers):
    itemsize = jnp.dtype(compute_dtype).itemsize
    w_bytes = (wcat_shape[0] * wcat_shape[1]
               + sum(v * h for v, h in w2_shapes)) * itemsize * weight_buffers
    act_bytes = 2 * tile_b * (d_pad * itemsize + 4)       # double-buffered x^T + tgt
    z_bytes = wcat_shape[0] * tile_b * 4                  # f32 fused matmul output
    mid_bytes = wcat_shape[0] * tile_b * itemsize         # bf16 mid_all copy (upper bound)
    logit_bytes = max(v for v, _ in w2_shapes) * tile_b * 4
    out_bytes = 2 * tile_b * 4
    scratch_bytes = 2 * tile_b * 8
    slack = 2 * 1024 * 1024                               # compiler internal scratch
    return (w_bytes + act_bytes + z_bytes + mid_bytes + logit_bytes
            + out_bytes + scratch_bytes + slack)


def adaptive_softmax_forward(params, x, target, *, tile_b=None):
    """Fused adaptive-softmax forward. Returns (output [B] f32, loss scalar)."""
    B, ninp = x.shape
    assert ninp == params["ninp"]
    cd = params["compute_dtype"]
    d_pad = params["d_pad"]
    n_tail = params["n_tail"]
    cutoff_values = params["cutoff_values"]
    wcat, w2_pads = params["wcat"], params["w2_pads"]
    w2_shapes = [(w.shape[0], w.shape[1]) for w in w2_pads]

    phys_vmem = _physical_vmem_bytes()
    if tile_b is None:
        tile_b = _mxu_lane_width()
        # Re-derive the VMEM budget (matters on v7x's 64 MiB): fall back to 128.
        while tile_b > 128 and _vmem_estimate_bytes(
                tile_b=tile_b, d_pad=d_pad, wcat_shape=wcat.shape,
                w2_shapes=w2_shapes, compute_dtype=cd,
                weight_buffers=1) > 0.45 * phys_vmem:
            tile_b //= 2

    b_pad = _round_up(B, tile_b)
    n_tiles = b_pad // tile_b

    # Activations: transpose once (tiny, B*ninp) so batch lies on the lane axis.
    xt = jnp.zeros((d_pad, b_pad), cd)
    xt = xt.at[:ninp, :B].set(jnp.asarray(x, cd).T)
    tgt = jnp.zeros((1, b_pad), jnp.int32)
    tgt = tgt.at[0, :B].set(jnp.asarray(target, jnp.int32))
    # NOTE: out-of-range targets (t<0 or t>=ntokens) are not checked here
    # (PyTorch would raise); they produce a finite but meaningless log-prob.

    # Per-tile / per-cluster row counts -> SMEM via scalar prefetch so empty
    # tail clusters are skipped inside the kernel.
    tgt_tiles = tgt.reshape(n_tiles, tile_b)
    cnt_cols = []
    for i in range(n_tail):
        lo, hi = cutoff_values[i + 1], cutoff_values[i + 2]
        cnt_cols.append(jnp.sum((tgt_tiles >= lo) & (tgt_tiles < hi),
                                axis=1, dtype=jnp.int32))
    counts = jnp.stack(cnt_cols, axis=1).reshape(-1).astype(jnp.int32)  # (n_tiles*n_tail,)

    kernel = _make_kernel(
        tile_b=tile_b, n_tail=n_tail, cutoff_values=cutoff_values,
        head_size=params["head_size"], head_pad=params["head_pad"],
        h_pad=params["h_pad"], h_off=params["h_off"],
        tail_vocab=params["tail_vocab"], compute_dtype=cd)

    def build(single_buffer_weights):
        def resident(shape):  # full array, fetched once, resident across the grid
            kwargs = {}
            if single_buffer_weights:
                kwargs["pipeline_mode"] = pl.Buffered(1)  # no need to double-buffer constants
            return pl.BlockSpec(shape, lambda b, cnt: tuple(0 for _ in shape), **kwargs)

        in_specs = [
            pl.BlockSpec((d_pad, tile_b), lambda b, cnt: (0, b)),   # x^T batch tile
            pl.BlockSpec((1, tile_b), lambda b, cnt: (0, b)),       # target batch tile
            resident(wcat.shape),
        ] + [resident(w.shape) for w in w2_pads]

        out_specs = pl.BlockSpec((1, tile_b), lambda b, cnt: (0, b))

        vmem_needed = _vmem_estimate_bytes(
            tile_b=tile_b, d_pad=d_pad, wcat_shape=wcat.shape,
            w2_shapes=w2_shapes, compute_dtype=cd,
            weight_buffers=1 if single_buffer_weights else 2)
        vmem_limit = int(min(0.9 * phys_vmem,
                             max(16 * 1024 * 1024, 1.5 * vmem_needed)))

        # Advisory cost estimate so XLA schedules surrounding ops sensibly.
        flops = 2 * b_pad * d_pad * wcat.shape[0]
        flops += sum(2 * b_pad * v * h for v, h in w2_shapes)
        transcendentals = b_pad * (params["head_pad"] + sum(v for v, _ in w2_shapes))
        bytes_accessed = sum(int(a.size) * a.dtype.itemsize
                             for a in (xt, tgt, wcat, *w2_pads))
        bytes_accessed += int(counts.size) * 4 + b_pad * 4

        return pl.pallas_call(
            kernel,
            out_shape=jax.ShapeDtypeStruct((1, b_pad), jnp.float32),
            grid_spec=pltpu.PrefetchScalarGridSpec(
                num_scalar_prefetch=1,
                grid=(n_tiles,),
                in_specs=in_specs,
                out_specs=out_specs,
                scratch_shapes=[pltpu.VMEM((1, tile_b), jnp.float32),
                                pltpu.VMEM((1, tile_b), jnp.int32)]),
            compiler_params=pltpu.CompilerParams(
                dimension_semantics=("parallel",),       # megacore-shards batch on v7x
                vmem_limit_bytes=vmem_limit),
            cost_estimate=pl.CostEstimate(
                flops=int(flops), transcendentals=int(transcendentals),
                bytes_accessed=int(bytes_accessed)),
        )

    args = (counts, xt, tgt, wcat, *w2_pads)
    try:
        out = build(single_buffer_weights=True)(*args)
    except Exception:
        # pipeline_mode=pl.Buffered(1) not supported by this jax/Mosaic build:
        # fall back to default double-buffered resident weights.
        out = build(single_buffer_weights=False)(*args)

    output = out[0, :B]
    # Tiny scalar reduction done outside the kernel so the batch grid axis can
    # stay "parallel" (no cross-tile accumulator needed inside the kernel).
    loss = jnp.mean(-output)
    return output, loss


# ------------- pure-JAX reference (mirrors the module + kernel precision) -------------
def adaptive_softmax_reference(x, target, w_head, tail_weights, cutoffs, ntokens,
                               compute_dtype=jnp.bfloat16):
    cutoff_values = [0] + list(cutoffs) + [ntokens]
    B = x.shape[0]
    xc = x.astype(compute_dtype)
    output = jnp.zeros((B,), jnp.float32)
    gather_inds = target.astype(jnp.int32)
    for i in range(1, len(cutoff_values) - 1):
        lo, hi = cutoff_values[i], cutoff_values[i + 1]
        mask = (target >= lo) & (target < hi)
        rel = jnp.clip(target - lo, 0, hi - lo - 1)
        w1, w2 = tail_weights[i - 1]
        mid = jnp.dot(xc, w1.astype(compute_dtype).T,
                      preferred_element_type=jnp.float32).astype(compute_dtype)
        logits = jnp.dot(mid, w2.astype(compute_dtype).T,
                         preferred_element_type=jnp.float32)
        lp = jax.nn.log_softmax(logits, axis=1)
        local = jnp.take_along_axis(lp, rel[:, None], axis=1)[:, 0]
        output = jnp.where(mask, local, output)
        gather_inds = jnp.where(mask, cutoff_values[1] + i - 1, gather_inds)
    head_logits = jnp.dot(xc, w_head.astype(compute_dtype).T,
                          preferred_element_type=jnp.float32)
    head_lp = jax.nn.log_softmax(head_logits, axis=1)
    output = output + jnp.take_along_axis(head_lp, gather_inds[:, None], axis=1)[:, 0]
    return output, jnp.mean(-output)


if __name__ == "__main__":
    # Small config consistent with AdaptiveSoftmax.__init__
    ninp = 64
    ntokens = 48
    cutoffs = [16, 32]
    div_value = 4
    B = 8

    full_cutoffs = cutoffs + [ntokens]
    n_tail = len(full_cutoffs) - 1
    head_out = cutoffs[0] + n_tail
    cutoff_values = [0] + full_cutoffs

    key = jax.random.PRNGKey(0)
    k_x, k_t, k_h, *k_tail = jax.random.split(key, 3 + 2 * n_tail)

    x = jax.random.normal(k_x, (B, ninp), jnp.float32)
    target = jax.random.randint(k_t, (B,), 0, ntokens, jnp.int32)

    # Deterministic synthetic parameters (PyTorch Linear weight layout [out, in]).
    w_head = jax.random.normal(k_h, (head_out, ninp), jnp.float32) / jnp.sqrt(ninp)
    tail_weights = []
    for i in range(n_tail):
        hid = ninp // div_value ** (i + 1)
        vocab = cutoff_values[i + 2] - cutoff_values[i + 1]
        w1 = jax.random.normal(k_tail[2 * i], (hid, ninp), jnp.float32) / jnp.sqrt(ninp)
        w2 = jax.random.normal(k_tail[2 * i + 1], (vocab, hid), jnp.float32) / jnp.sqrt(hid)
        tail_weights.append((w1, w2))

    params = prepare_adaptive_softmax_params(w_head, tail_weights, cutoffs, ntokens)
    out, loss = adaptive_softmax_forward(params, x, target)   # tile_b auto per chip
    out = jax.block_until_ready(out)
    loss = jax.block_until_ready(loss)

    ref_out, ref_loss = adaptive_softmax_reference(x, target, w_head, tail_weights,
                                                   cutoffs, ntokens)
    assert jnp.allclose(out, ref_out, atol=2e-3, rtol=2e-3), (out, ref_out)
    assert jnp.allclose(loss, ref_loss, atol=2e-3, rtol=2e-3), (loss, ref_loss)

    print("KERNEL_OK")
</pallas_src>

<mosaic_0001>
module attributes {stable_mosaic.version = 11 : i64} {
  func.func @kernel(%arg0: i32, %arg1: memref<2xi32, #tpu.memory_space<smem>>, %arg2: memref<128x128xbf16, #tpu.memory_space<vmem>>, %arg3: memref<1x128xi32, #tpu.memory_space<vmem>>, %arg4: memref<384x128xbf16, #tpu.memory_space<vmem>>, %arg5: memref<16x128xbf16, #tpu.memory_space<vmem>>, %arg6: memref<16x128xbf16, #tpu.memory_space<vmem>>, %arg7: memref<1x128xf32, #tpu.memory_space<vmem>>, %arg8: memref<1x128xf32, #tpu.memory_space<vmem>>, %arg9: memref<1x128xi32, #tpu.memory_space<vmem>>) attributes {dimension_semantics = [#tpu.dimension_semantics<parallel>], iteration_bounds = array<i64: 1>, scalar_prefetch = 1 : i64, scratch_operands = 2 : i64, tpu.core_type = #tpu.core_type<tc>, window_params = [{transform_indices = @transform_0, window_bounds = array<i64: 128, 128>}, {transform_indices = @transform_1, window_bounds = array<i64: 1, 128>}, {pipeline_mode = #tpu.pipeline_mode<synchronous>, transform_indices = @transform_2, window_bounds = array<i64: 384, 128>}, {pipeline_mode = #tpu.pipeline_mode<synchronous>, transform_indices = @transform_3, window_bounds = array<i64: 16, 128>}, {pipeline_mode = #tpu.pipeline_mode<synchronous>, transform_indices = @transform_4, window_bounds = array<i64: 16, 128>}, {transform_indices = @transform_5, window_bounds = array<i64: 1, 128>}]} {
    %c0 = arith.constant 0 : index
    %c0_0 = arith.constant 0 : index
    %0 = vector.load %arg2[%c0, %c0_0] : memref<128x128xbf16, #tpu.memory_space<vmem>>, vector<128x128xbf16>
    %c0_1 = arith.constant 0 : index
    %c0_2 = arith.constant 0 : index
    %1 = vector.load %arg3[%c0_1, %c0_2] : memref<1x128xi32, #tpu.memory_space<vmem>>, vector<1x128xi32>
    %c0_3 = arith.constant 0 : index
    %c0_4 = arith.constant 0 : index
    %2 = vector.load %arg4[%c0_3, %c0_4] : memref<384x128xbf16, #tpu.memory_space<vmem>>, vector<384x128xbf16>
    %cst = arith.constant dense<0.000000e+00> : vector<384x128xf32>
    %3 = tpu.matmul %2, %0, %cst {dimension_numbers = #tpu.dot_dimension_numbers<[1], [0], [0], [1], [0, 0, 1, 1], [], []>} : vector<384x128xbf16>, vector<128x128xbf16>, vector<384x128xf32> -> vector<384x128xf32>
    %4 = vector.extract_strided_slice %3 {offsets = [0, 0], sizes = [128, 128], strides = [1, 1]} : vector<384x128xf32> to vector<128x128xf32>
    %5 = vector.extract_strided_slice %3 {offsets = [128, 0], sizes = [256, 128], strides = [1, 1]} : vector<384x128xf32> to vector<256x128xf32>
    %6 = arith.truncf %5 : vector<256x128xf32> to vector<256x128xbf16>
    %cst_5 = arith.constant 0.000000e+00 : f32
    %7 = vector.broadcast %cst_5 : f32 to vector<1x128xf32>
    %c0_6 = arith.constant 0 : index
    %c0_7 = arith.constant 0 : index
    %8 = vector.load %arg8[%c0_6, %c0_7] : memref<1x128xf32, #tpu.memory_space<vmem>>, vector<1x128xf32>
    tpu.vector_store %arg8[%c0_6, %c0_7], %7 {strides = array<i32>} : memref<1x128xf32, #tpu.memory_space<vmem>>, vector<1x128xf32>,
    %c0_8 = arith.constant 0 : index
    %c0_9 = arith.constant 0 : index
    %9 = vector.load %arg9[%c0_8, %c0_9] : memref<1x128xi32, #tpu.memory_space<vmem>>, vector<1x128xi32>
    tpu.vector_store %arg9[%c0_8, %c0_9], %1 {strides = array<i32>} : memref<1x128xi32, #tpu.memory_space<vmem>>, vector<1x128xi32>,
    %c2_i32 = arith.constant 2 : i32
    %10 = arith.muli %arg0, %c2_i32 : i32
    %c0_i32 = arith.constant 0 : i32
    %11 = arith.addi %10, %c0_i32 : i32
    %12 = arith.index_cast %11 : i32 to index
    %13 = memref.load %arg1[%12] : memref<2xi32, #tpu.memory_space<smem>>
    %c0_i32_10 = arith.constant 0 : i32
    %14 = arith.cmpi sgt, %13, %c0_i32_10 : i32
    %15 = arith.extui %14 : i1 to i32
    %c0_i32_11 = arith.constant 0 : i32
    %16 = arith.cmpi ne, %15, %c0_i32_11 : i32
    scf.if %16 {
      %c16_i32 = arith.constant 16 : i32
      %49 = vector.broadcast %c16_i32 : i32 to vector<1x128xi32>
      %50 = arith.cmpi sge, %1, %49 : vector<1x128xi32>
      %c32_i32 = arith.constant 32 : i32
      %51 = vector.broadcast %c32_i32 : i32 to vector<1x128xi32>
      %52 = arith.cmpi slt, %1, %51 : vector<1x128xi32>
      %53 = arith.andi %50, %52 : vector<1x128xi1>
      %c16_i32_26 = arith.constant 16 : i32
      %54 = vector.broadcast %c16_i32_26 : i32 to vector<1x128xi32>
      %55 = arith.subi %1, %54 : vector<1x128xi32>
      %c0_i32_27 = arith.constant 0 : i32
      %c15_i32 = arith.constant 15 : i32
      %56 = vector.broadcast %c0_i32_27 : i32 to vector<1x128xi32>
      %57 = arith.maxsi %56, %55 : vector<1x128xi32>
      %58 = vector.broadcast %c15_i32 : i32 to vector<1x128xi32>
      %59 = arith.minsi %58, %57 : vector<1x128xi32>
      %60 = vector.extract_strided_slice %6 {offsets = [0, 0], sizes = [128, 128], strides = [1, 1]} : vector<256x128xbf16> to vector<128x128xbf16>
      %c0_28 = arith.constant 0 : index
      %c0_29 = arith.constant 0 : index
      %61 = vector.load %arg5[%c0_28, %c0_29] : memref<16x128xbf16, #tpu.memory_space<vmem>>, vector<16x128xbf16>
      %cst_30 = arith.constant dense<0.000000e+00> : vector<16x128xf32>
      %62 = tpu.matmul %61, %60, %cst_30 {dimension_numbers = #tpu.dot_dimension_numbers<[1], [0], [0], [1], [0, 0, 1, 1], [], []>} : vector<16x128xbf16>, vector<128x128xbf16>, vector<16x128xf32> -> vector<16x128xf32>
      %63 = tpu.iota {dimensions = array<i32: 0>} : vector<16x128xi32>
      %cst_31 = arith.constant dense<0xFF800000> : vector<128xf32>
      %64 = vector.multi_reduction <maximumf>, %62, %cst_31 [0] : vector<16x128xf32> to vector<128xf32>
      %65 = vector.shape_cast %64 : vector<128xf32> to vector<1x128xf32>
      %66 = vector.broadcast %65 : vector<1x128xf32> to vector<16x128xf32>
      %67 = arith.subf %62, %66 : vector<16x128xf32>
      %68 = math.exp %67 : vector<16x128xf32>
      %cst_32 = arith.constant dense<0.000000e+00> : vector<128xf32>
      %69 = vector.multi_reduction <add>, %68, %cst_32 [0] : vector<16x128xf32> to vector<128xf32>
      %70 = vector.shape_cast %69 : vector<128xf32> to vector<1x128xf32>
      %71 = vector.broadcast %59 : vector<1x128xi32> to vector<16x128xi32>
      %72 = arith.cmpi eq, %63, %71 : vector<16x128xi32>
      %cst_33 = arith.constant 0.000000e+00 : f32
      %73 = vector.broadcast %cst_33 : f32 to vector<16x128xf32>
      %74 = arith.select %72, %62, %73 : vector<16x128xi1>, vector<16x128xf32>
      %cst_34 = arith.constant dense<0.000000e+00> : vector<128xf32>
      %75 = vector.multi_reduction <add>, %74, %cst_34 [0] : vector<16x128xf32> to vector<128xf32>
      %76 = vector.shape_cast %75 : vector<128xf32> to vector<1x128xf32>
      %77 = arith.subf %76, %65 : vector<1x128xf32>
      %78 = math.log %70 : vector<1x128xf32>
      %79 = arith.subf %77, %78 : vector<1x128xf32>
      %c0_35 = arith.constant 0 : index
      %c0_36 = arith.constant 0 : index
      %80 = vector.load %arg8[%c0_35, %c0_36] : memref<1x128xf32, #tpu.memory_space<vmem>>, vector<1x128xf32>
      %81 = arith.select %53, %79, %80 : vector<1x128xi1>, vector<1x128xf32>
      %c0_37 = arith.constant 0 : index
      %c0_38 = arith.constant 0 : index
      %82 = vector.load %arg8[%c0_37, %c0_38] : memref<1x128xf32, #tpu.memory_space<vmem>>, vector<1x128xf32>
      tpu.vector_store %arg8[%c0_37, %c0_38], %81 {strides = array<i32>} : memref<1x128xf32, #tpu.memory_space<vmem>>, vector<1x128xf32>,
      %c0_39 = arith.constant 0 : index
      %c0_40 = arith.constant 0 : index
      %83 = vector.load %arg9[%c0_39, %c0_40] : memref<1x128xi32, #tpu.memory_space<vmem>>, vector<1x128xi32>
      %c16_i32_41 = arith.constant 16 : i32
      %84 = vector.broadcast %c16_i32_41 : i32 to vector<1x128xi32>
      %85 = arith.select %53, %84, %83 : vector<1x128xi1>, vector<1x128xi32>
      %c0_42 = arith.constant 0 : index
      %c0_43 = arith.constant 0 : index
      %86 = vector.load %arg9[%c0_42, %c0_43] : memref<1x128xi32, #tpu.memory_space<vmem>>, vector<1x128xi32>
      tpu.vector_store %arg9[%c0_42, %c0_43], %85 {strides = array<i32>} : memref<1x128xi32, #tpu.memory_space<vmem>>, vector<1x128xi32>,
    } else {
    }
    %c2_i32_12 = arith.constant 2 : i32
    %17 = arith.muli %arg0, %c2_i32_12 : i32
    %c1_i32 = arith.constant 1 : i32
    %18 = arith.addi %17, %c1_i32 : i32
    %19 = arith.index_cast %18 : i32 to index
    %20 = memref.load %arg1[%19] : memref<2xi32, #tpu.memory_space<smem>>
    %c0_i32_13 = arith.constant 0 : i32
    %21 = arith.cmpi sgt, %20, %c0_i32_13 : i32
    %22 = arith.extui %21 : i1 to i32
    %c0_i32_14 = arith.constant 0 : i32
    %23 = arith.cmpi ne, %22, %c0_i32_14 : i32
    scf.if %23 {
      %c32_i32 = arith.constant 32 : i32
      %49 = vector.broadcast %c32_i32 : i32 to vector<1x128xi32>
      %50 = arith.cmpi sge, %1, %49 : vector<1x128xi32>
      %c48_i32 = arith.constant 48 : i32
      %51 = vector.broadcast %c48_i32 : i32 to vector<1x128xi32>
      %52 = arith.cmpi slt, %1, %51 : vector<1x128xi32>
      %53 = arith.andi %50, %52 : vector<1x128xi1>
      %c32_i32_26 = arith.constant 32 : i32
      %54 = vector.broadcast %c32_i32_26 : i32 to vector<1x128xi32>
      %55 = arith.subi %1, %54 : vector<1x128xi32>
      %c0_i32_27 = arith.constant 0 : i32
      %c15_i32 = arith.constant 15 : i32
      %56 = vector.broadcast %c0_i32_27 : i32 to vector<1x128xi32>
      %57 = arith.maxsi %56, %55 : vector<1x128xi32>
      %58 = vector.broadcast %c15_i32 : i32 to vector<1x128xi32>
      %59 = arith.minsi %58, %57 : vector<1x128xi32>
      %60 = vector.extract_strided_slice %6 {offsets = [128, 0], sizes = [128, 128], strides = [1, 1]} : vector<256x128xbf16> to vector<128x128xbf16>
      %c0_28 = arith.constant 0 : index
      %c0_29 = arith.constant 0 : index
      %61 = vector.load %arg6[%c0_28, %c0_29] : memref<16x128xbf16, #tpu.memory_space<vmem>>, vector<16x128xbf16>
      %cst_30 = arith.constant dense<0.000000e+00> : vector<16x128xf32>
      %62 = tpu.matmul %61, %60, %cst_30 {dimension_numbers = #tpu.dot_dimension_numbers<[1], [0], [0], [1], [0, 0, 1, 1], [], []>} : vector<16x128xbf16>, vector<128x128xbf16>, vector<16x128xf32> -> vector<16x128xf32>
      %63 = tpu.iota {dimensions = array<i32: 0>} : vector<16x128xi32>
      %cst_31 = arith.constant dense<0xFF800000> : vector<128xf32>
      %64 = vector.multi_reduction <maximumf>, %62, %cst_31 [0] : vector<16x128xf32> to vector<128xf32>
      %65 = vector.shape_cast %64 : vector<128xf32> to vector<1x128xf32>
      %66 = vector.broadcast %65 : vector<1x128xf32> to vector<16x128xf32>
      %67 = arith.subf %62, %66 : vector<16x128xf32>
      %68 = math.exp %67 : vector<16x128xf32>
      %cst_32 = arith.constant dense<0.000000e+00> : vector<128xf32>
      %69 = vector.multi_reduction <add>, %68, %cst_32 [0] : vector<16x128xf32> to vector<128xf32>
      %70 = vector.shape_cast %69 : vector<128xf32> to vector<1x128xf32>
      %71 = vector.broadcast %59 : vector<1x128xi32> to vector<16x128xi32>
      %72 = arith.cmpi eq, %63, %71 : vector<16x128xi32>
      %cst_33 = arith.constant 0.000000e+00 : f32
      %73 = vector.broadcast %cst_33 : f32 to vector<16x128xf32>
      %74 = arith.select %72, %62, %73 : vector<16x128xi1>, vector<16x128xf32>
      %cst_34 = arith.constant dense<0.000000e+00> : vector<128xf32>
      %75 = vector.multi_reduction <add>, %74, %cst_34 [0] : vector<16x128xf32> to vector<128xf32>
      %76 = vector.shape_cast %75 : vector<128xf32> to vector<1x128xf32>
      %77 = arith.subf %76, %65 : vector<1x128xf32>
      %78 = math.log %70 : vector<1x128xf32>
      %79 = arith.subf %77, %78 : vector<1x128xf32>
      %c0_35 = arith.constant 0 : index
      %c0_36 = arith.constant 0 : index
      %80 = vector.load %arg8[%c0_35, %c0_36] : memref<1x128xf32, #tpu.memory_space<vmem>>, vector<1x128xf32>
      %81 = arith.select %53, %79, %80 : vector<1x128xi1>, vector<1x128xf32>
      %c0_37 = arith.constant 0 : index
      %c0_38 = arith.constant 0 : index
      %82 = vector.load %arg8[%c0_37, %c0_38] : memref<1x128xf32, #tpu.memory_space<vmem>>, vector<1x128xf32>
      tpu.vector_store %arg8[%c0_37, %c0_38], %81 {strides = array<i32>} : memref<1x128xf32, #tpu.memory_space<vmem>>, vector<1x128xf32>,
      %c0_39 = arith.constant 0 : index
      %c0_40 = arith.constant 0 : index
      %83 = vector.load %arg9[%c0_39, %c0_40] : memref<1x128xi32, #tpu.memory_space<vmem>>, vector<1x128xi32>
      %c17_i32 = arith.constant 17 : i32
      %84 = vector.broadcast %c17_i32 : i32 to vector<1x128xi32>
      %85 = arith.select %53, %84, %83 : vector<1x128xi1>, vector<1x128xi32>
      %c0_41 = arith.constant 0 : index
      %c0_42 = arith.constant 0 : index
      %86 = vector.load %arg9[%c0_41, %c0_42] : memref<1x128xi32, #tpu.memory_space<vmem>>, vector<1x128xi32>
      tpu.vector_store %arg9[%c0_41, %c0_42], %85 {strides = array<i32>} : memref<1x128xi32, #tpu.memory_space<vmem>>, vector<1x128xi32>,
    } else {
    }
    %c0_15 = arith.constant 0 : index
    %c0_16 = arith.constant 0 : index
    %24 = vector.load %arg9[%c0_15, %c0_16] : memref<1x128xi32, #tpu.memory_space<vmem>>, vector<1x128xi32>
    %25 = tpu.iota {dimensions = array<i32: 0>} : vector<128x128xi32>
    %c18_i32 = arith.constant 18 : i32
    %26 = vector.broadcast %c18_i32 : i32 to vector<128x128xi32>
    %27 = arith.cmpi slt, %25, %26 : vector<128x128xi32>
    %cst_17 = arith.constant -1.000000e+30 : f32
    %28 = vector.broadcast %cst_17 : f32 to vector<128x128xf32>
    %29 = arith.select %27, %4, %28 : vector<128x128xi1>, vector<128x128xf32>
    %cst_18 = arith.constant dense<0xFF800000> : vector<128xf32>
    %30 = vector.multi_reduction <maximumf>, %29, %cst_18 [0] : vector<128x128xf32> to vector<128xf32>
    %31 = vector.shape_cast %30 : vector<128xf32> to vector<1x128xf32>
    %32 = vector.broadcast %31 : vector<1x128xf32> to vector<128x128xf32>
    %33 = arith.subf %29, %32 : vector<128x128xf32>
    %34 = math.exp %33 : vector<128x128xf32>
    %cst_19 = arith.constant dense<0.000000e+00> : vector<128xf32>
    %35 = vector.multi_reduction <add>, %34, %cst_19 [0] : vector<128x128xf32> to vector<128xf32>
    %36 = vector.shape_cast %35 : vector<128xf32> to vector<1x128xf32>
    %37 = vector.broadcast %24 : vector<1x128xi32> to vector<128x128xi32>
    %38 = arith.cmpi eq, %25, %37 : vector<128x128xi32>
    %cst_20 = arith.constant 0.000000e+00 : f32
    %39 = vector.broadcast %cst_20 : f32 to vector<128x128xf32>
    %40 = arith.select %38, %29, %39 : vector<128x128xi1>, vector<128x128xf32>
    %cst_21 = arith.constant dense<0.000000e+00> : vector<128xf32>
    %41 = vector.multi_reduction <add>, %40, %cst_21 [0] : vector<128x128xf32> to vector<128xf32>
    %42 = vector.shape_cast %41 : vector<128xf32> to vector<1x128xf32>
    %43 = arith.subf %42, %31 : vector<1x128xf32>
    %44 = math.log %36 : vector<1x128xf32>
    %45 = arith.subf %43, %44 : vector<1x128xf32>
    %c0_22 = arith.constant 0 : index
    %c0_23 = arith.constant 0 : index
    %46 = vector.load %arg8[%c0_22, %c0_23] : memref<1x128xf32, #tpu.memory_space<vmem>>, vector<1x128xf32>
    %47 = arith.addf %46, %45 : vector<1x128xf32>
    %c0_24 = arith.constant 0 : index
    %c0_25 = arith.constant 0 : index
    %48 = vector.load %arg7[%c0_24, %c0_25] : memref<1x128xf32, #tpu.memory_space<vmem>>, vector<1x128xf32>
    tpu.vector_store %arg7[%c0_24, %c0_25], %47 {strides = array<i32>} : memref<1x128xf32, #tpu.memory_space<vmem>>, vector<1x128xf32>,
    return
  }
  func.func @transform_0(%arg0: i32, %arg1: memref<2xi32, #tpu.memory_space<smem>>) -> (i32, i32) {
    %c0_i32 = arith.constant 0 : i32
    %c0_i32_0 = arith.constant 0 : i32
    return %c0_i32, %arg0 : i32, i32
  }
  func.func @transform_1(%arg0: i32, %arg1: memref<2xi32, #tpu.memory_space<smem>>) -> (i32, i32) {
    %c0_i32 = arith.constant 0 : i32
    %c0_i32_0 = arith.constant 0 : i32
    return %c0_i32, %arg0 : i32, i32
  }
  func.func @transform_2(%arg0: i32, %arg1: memref<2xi32, #tpu.memory_space<smem>>) -> (i32, i32) {
    %c0_i32 = arith.constant 0 : i32
    %c0_i32_0 = arith.constant 0 : i32
    %c0_i32_1 = arith.constant 0 : i32
    return %c0_i32, %c0_i32_0 : i32, i32
  }
  func.func @transform_3(%arg0: i32, %arg1: memref<2xi32, #tpu.memory_space<smem>>) -> (i32, i32) {
    %c0_i32 = arith.constant 0 : i32
    %c0_i32_0 = arith.constant 0 : i32
    %c0_i32_1 = arith.constant 0 : i32
    return %c0_i32, %c0_i32_0 : i32, i32
  }
  func.func @transform_4(%arg0: i32, %arg1: memref<2xi32, #tpu.memory_space<smem>>) -> (i32, i32) {
    %c0_i32 = arith.constant 0 : i32
    %c0_i32_0 = arith.constant 0 : i32
    %c0_i32_1 = arith.constant 0 : i32
    return %c0_i32, %c0_i32_0 : i32, i32
  }
  func.func @transform_5(%arg0: i32, %arg1: memref<2xi32, #tpu.memory_space<smem>>) -> (i32, i32) {
    %c0_i32 = arith.constant 0 : i32
    %c0_i32_0 = arith.constant 0 : i32
    return %c0_i32, %arg0 : i32, i32
  }
}

module attributes {stable_mosaic.version = 11 : i64} {
  func.func @kernel(%arg0: i32, %arg1: memref<2xi32, #tpu.memory_space<smem>>, %arg2: memref<128x128xbf16, #tpu.memory_space<vmem>>, %arg3: memref<1x128xi32, #tpu.memory_space<vmem>>, %arg4: memref<384x128xbf16, #tpu.memory_space<vmem>>, %arg5: memref<16x128xbf16, #tpu.memory_space<vmem>>, %arg6: memref<16x128xbf16, #tpu.memory_space<vmem>>, %arg7: memref<1x128xf32, #tpu.memory_space<vmem>>, %arg8: memref<1x128xf32, #tpu.memory_space<vmem>>, %arg9: memref<1x128xi32, #tpu.memory_space<vmem>>) attributes {dimension_semantics = [#tpu.dimension_semantics<parallel>], iteration_bounds = array<i64: 1>, scalar_prefetch = 1 : i64, scratch_operands = 2 : i64, tpu.core_type = #tpu.core_type<tc>, window_params = [{transform_indices = @transform_0, window_bounds = array<i64: 128, 128>}, {transform_indices = @transform_1, window_bounds = array<i64: 1, 128>}, {pipeline_mode = #tpu.pipeline_mode<synchronous>, transform_indices = @transform_2, window_bounds = array<i64: 384, 128>}, {pipeline_mode = #tpu.pipeline_mode<synchronous>, transform_indices = @transform_3, window_bounds = array<i64: 16, 128>}, {pipeline_mode = #tpu.pipeline_mode<synchronous>, transform_indices = @transform_4, window_bounds = array<i64: 16, 128>}, {transform_indices = @transform_5, window_bounds = array<i64: 1, 128>}]} {
    %c0 = arith.constant 0 : index
    %c0_0 = arith.constant 0 : index
    %0 = vector.load %arg2[%c0, %c0_0] : memref<128x128xbf16, #tpu.memory_space<vmem>>, vector<128x128xbf16>
    %c0_1 = arith.constant 0 : index
    %c0_2 = arith.constant 0 : index
    %1 = vector.load %arg3[%c0_1, %c0_2] : memref<1x128xi32, #tpu.memory_space<vmem>>, vector<1x128xi32>
    %c0_3 = arith.constant 0 : index
    %c0_4 = arith.constant 0 : index
    %2 = vector.load %arg4[%c0_3, %c0_4] : memref<384x128xbf16, #tpu.memory_space<vmem>>, vector<384x128xbf16>
    %cst = arith.constant dense<0.000000e+00> : vector<384x128xf32>
    %3 = tpu.matmul %2, %0, %cst {dimension_numbers = #tpu.dot_dimension_numbers<[1], [0], [0], [1], [0, 0, 1, 1], [], []>} : vector<384x128xbf16>, vector<128x128xbf16>, vector<384x128xf32> -> vector<384x128xf32>
    %4 = vector.extract_strided_slice %3 {offsets = [0, 0], sizes = [128, 128], strides = [1, 1]} : vector<384x128xf32> to vector<128x128xf32>
    %5 = vector.extract_strided_slice %3 {offsets = [128, 0], sizes = [256, 128], strides = [1, 1]} : vector<384x128xf32> to vector<256x128xf32>
    %6 = arith.truncf %5 : vector<256x128xf32> to vector<256x128xbf16>
    %cst_5 = arith.constant 0.000000e+00 : f32
    %7 = vector.broadcast %cst_5 : f32 to vector<1x128xf32>
    %c0_6 = arith.constant 0 : index
    %c0_7 = arith.constant 0 : index
    %8 = vector.load %arg8[%c0_6, %c0_7] : memref<1x128xf32, #tpu.memory_space<vmem>>, vector<1x128xf32>
    tpu.vector_store %arg8[%c0_6, %c0_7], %7 {strides = array<i32>} : memref<1x128xf32, #tpu.memory_space<vmem>>, vector<1x128xf32>,
    %c0_8 = arith.constant 0 : index
    %c0_9 = arith.constant 0 : index
    %9 = vector.load %arg9[%c0_8, %c0_9] : memref<1x128xi32, #tpu.memory_space<vmem>>, vector<1x128xi32>
    tpu.vector_store %arg9[%c0_8, %c0_9], %1 {strides = array<i32>} : memref<1x128xi32, #tpu.memory_space<vmem>>, vector<1x128xi32>,
    %c2_i32 = arith.constant 2 : i32
    %10 = arith.muli %arg0, %c2_i32 : i32
    %c0_i32 = arith.constant 0 : i32
    %11 = arith.addi %10, %c0_i32 : i32
    %12 = arith.index_cast %11 : i32 to index
    %13 = memref.load %arg1[%12] : memref<2xi32, #tpu.memory_space<smem>>
    %c0_i32_10 = arith.constant 0 : i32
    %14 = arith.cmpi sgt, %13, %c0_i32_10 : i32
    %15 = arith.extui %14 : i1 to i32
    %c0_i32_11 = arith.constant 0 : i32
    %16 = arith.cmpi ne, %15, %c0_i32_11 : i32
    scf.if %16 {
      %c16_i32 = arith.constant 16 : i32
      %49 = vector.broadcast %c16_i32 : i32 to vector<1x128xi32>
      %50 = arith.cmpi sge, %1, %49 : vector<1x128xi32>
      %c32_i32 = arith.constant 32 : i32
      %51 = vector.broadcast %c32_i32 : i32 to vector<1x128xi32>
      %52 = arith.cmpi slt, %1, %51 : vector<1x128xi32>
      %53 = arith.andi %50, %52 : vector<1x128xi1>
      %c16_i32_26 = arith.constant 16 : i32
      %54 = vector.broadcast %c16_i32_26 : i32 to vector<1x128xi32>
      %55 = arith.subi %1, %54 : vector<1x128xi32>
      %c0_i32_27 = arith.constant 0 : i32
      %c15_i32 = arith.constant 15 : i32
      %56 = vector.broadcast %c0_i32_27 : i32 to vector<1x128xi32>
      %57 = arith.maxsi %56, %55 : vector<1x128xi32>
      %58 = vector.broadcast %c15_i32 : i32 to vector<1x128xi32>
      %59 = arith.minsi %58, %57 : vector<1x128xi32>
      %60 = vector.extract_strided_slice %6 {offsets = [0, 0], sizes = [128, 128], strides = [1, 1]} : vector<256x128xbf16> to vector<128x128xbf16>
      %c0_28 = arith.constant 0 : index
      %c0_29 = arith.constant 0 : index
      %61 = vector.load %arg5[%c0_28, %c0_29] : memref<16x128xbf16, #tpu.memory_space<vmem>>, vector<16x128xbf16>
      %cst_30 = arith.constant dense<0.000000e+00> : vector<16x128xf32>
      %62 = tpu.matmul %61, %60, %cst_30 {dimension_numbers = #tpu.dot_dimension_numbers<[1], [0], [0], [1], [0, 0, 1, 1], [], []>} : vector<16x128xbf16>, vector<128x128xbf16>, vector<16x128xf32> -> vector<16x128xf32>
      %63 = tpu.iota {dimensions = array<i32: 0>} : vector<16x128xi32>
      %cst_31 = arith.constant dense<0xFF800000> : vector<128xf32>
      %64 = vector.multi_reduction <maximumf>, %62, %cst_31 [0] : vector<16x128xf32> to vector<128xf32>
      %65 = vector.shape_cast %64 : vector<128xf32> to vector<1x128xf32>
      %66 = vector.broadcast %65 : vector<1x128xf32> to vector<16x128xf32>
      %67 = arith.subf %62, %66 : vector<16x128xf32>
      %68 = math.exp %67 : vector<16x128xf32>
      %cst_32 = arith.constant dense<0.000000e+00> : vector<128xf32>
      %69 = vector.multi_reduction <add>, %68, %cst_32 [0] : vector<16x128xf32> to vector<128xf32>
      %70 = vector.shape_cast %69 : vector<128xf32> to vector<1x128xf32>
      %71 = vector.broadcast %59 : vector<1x128xi32> to vector<16x128xi32>
      %72 = arith.cmpi eq, %63, %71 : vector<16x128xi32>
      %cst_33 = arith.constant 0.000000e+00 : f32
      %73 = vector.broadcast %cst_33 : f32 to vector<16x128xf32>
      %74 = arith.select %72, %62, %73 : vector<16x128xi1>, vector<16x128xf32>
      %cst_34 = arith.constant dense<0.000000e+00> : vector<128xf32>
      %75 = vector.multi_reduction <add>, %74, %cst_34 [0] : vector<16x128xf32> to vector<128xf32>
      %76 = vector.shape_cast %75 : vector<128xf32> to vector<1x128xf32>
      %77 = arith.subf %76, %65 : vector<1x128xf32>
      %78 = math.log %70 : vector<1x128xf32>
      %79 = arith.subf %77, %78 : vector<1x128xf32>
      %c0_35 = arith.constant 0 : index
      %c0_36 = arith.constant 0 : index
      %80 = vector.load %arg8[%c0_35, %c0_36] : memref<1x128xf32, #tpu.memory_space<vmem>>, vector<1x128xf32>
      %81 = arith.select %53, %79, %80 : vector<1x128xi1>, vector<1x128xf32>
      %c0_37 = arith.constant 0 : index
      %c0_38 = arith.constant 0 : index
      %82 = vector.load %arg8[%c0_37, %c0_38] : memref<1x128xf32, #tpu.memory_space<vmem>>, vector<1x128xf32>
      tpu.vector_store %arg8[%c0_37, %c0_38], %81 {strides = array<i32>} : memref<1x128xf32, #tpu.memory_space<vmem>>, vector<1x128xf32>,
      %c0_39 = arith.constant 0 : index
      %c0_40 = arith.constant 0 : index
      %83 = vector.load %arg9[%c0_39, %c0_40] : memref<1x128xi32, #tpu.memory_space<vmem>>, vector<1x128xi32>
      %c16_i32_41 = arith.constant 16 : i32
      %84 = vector.broadcast %c16_i32_41 : i32 to vector<1x128xi32>
      %85 = arith.select %53, %84, %83 : vector<1x128xi1>, vector<1x128xi32>
      %c0_42 = arith.constant 0 : index
      %c0_43 = arith.constant 0 : index
      %86 = vector.load %arg9[%c0_42, %c0_43] : memref<1x128xi32, #tpu.memory_space<vmem>>, vector<1x128xi32>
      tpu.vector_store %arg9[%c0_42, %c0_43], %85 {strides = array<i32>} : memref<1x128xi32, #tpu.memory_space<vmem>>, vector<1x128xi32>,
    } else {
    }
    %c2_i32_12 = arith.constant 2 : i32
    %17 = arith.muli %arg0, %c2_i32_12 : i32
    %c1_i32 = arith.constant 1 : i32
    %18 = arith.addi %17, %c1_i32 : i32
    %19 = arith.index_cast %18 : i32 to index
    %20 = memref.load %arg1[%19] : memref<2xi32, #tpu.memory_space<smem>>
    %c0_i32_13 = arith.constant 0 : i32
    %21 = arith.cmpi sgt, %20, %c0_i32_13 : i32
    %22 = arith.extui %21 : i1 to i32
    %c0_i32_14 = arith.constant 0 : i32
    %23 = arith.cmpi ne, %22, %c0_i32_14 : i32
    scf.if %23 {
      %c32_i32 = arith.constant 32 : i32
      %49 = vector.broadcast %c32_i32 : i32 to vector<1x128xi32>
      %50 = arith.cmpi sge, %1, %49 : vector<1x128xi32>
      %c48_i32 = arith.constant 48 : i32
      %51 = vector.broadcast %c48_i32 : i32 to vector<1x128xi32>
      %52 = arith.cmpi slt, %1, %51 : vector<1x128xi32>
      %53 = arith.andi %50, %52 : vector<1x128xi1>
      %c32_i32_26 = arith.constant 32 : i32
      %54 = vector.broadcast %c32_i32_26 : i32 to vector<1x128xi32>
      %55 = arith.subi %1, %54 : vector<1x128xi32>
      %c0_i32_27 = arith.constant 0 : i32
      %c15_i32 = arith.constant 15 : i32
      %56 = vector.broadcast %c0_i32_27 : i32 to vector<1x128xi32>
      %57 = arith.maxsi %56, %55 : vector<1x128xi32>
      %58 = vector.broadcast %c15_i32 : i32 to vector<1x128xi32>
      %59 = arith.minsi %58, %57 : vector<1x128xi32>
      %60 = vector.extract_strided_slice %6 {offsets = [128, 0], sizes = [128, 128], strides = [1, 1]} : vector<256x128xbf16> to vector<128x128xbf16>
      %c0_28 = arith.constant 0 : index
      %c0_29 = arith.constant 0 : index
      %61 = vector.load %arg6[%c0_28, %c0_29] : memref<16x128xbf16, #tpu.memory_space<vmem>>, vector<16x128xbf16>
      %cst_30 = arith.constant dense<0.000000e+00> : vector<16x128xf32>
      %62 = tpu.matmul %61, %60, %cst_30 {dimension_numbers = #tpu.dot_dimension_numbers<[1], [0], [0], [1], [0, 0, 1, 1], [], []>} : vector<16x128xbf16>, vector<128x128xbf16>, vector<16x128xf32> -> vector<16x128xf32>
      %63 = tpu.iota {dimensions = array<i32: 0>} : vector<16x128xi32>
      %cst_31 = arith.constant dense<0xFF800000> : vector<128xf32>
      %64 = vector.multi_reduction <maximumf>, %62, %cst_31 [0] : vector<16x128xf32> to vector<128xf32>
      %65 = vector.shape_cast %64 : vector<128xf32> to vector<1x128xf32>
      %66 = vector.broadcast %65 : vector<1x128xf32> to vector<16x128xf32>
      %67 = arith.subf %62, %66 : vector<16x128xf32>
      %68 = math.exp %67 : vector<16x128xf32>
      %cst_32 = arith.constant dense<0.000000e+00> : vector<128xf32>
      %69 = vector.multi_reduction <add>, %68, %cst_32 [0] : vector<16x128xf32> to vector<128xf32>
      %70 = vector.shape_cast %69 : vector<128xf32> to vector<1x128xf32>
      %71 = vector.broadcast %59 : vector<1x128xi32> to vector<16x128xi32>
      %72 = arith.cmpi eq, %63, %71 : vector<16x128xi32>
      %cst_33 = arith.constant 0.000000e+00 : f32
      %73 = vector.broadcast %cst_33 : f32 to vector<16x128xf32>
      %74 = arith.select %72, %62, %73 : vector<16x128xi1>, vector<16x128xf32>
      %cst_34 = arith.constant dense<0.000000e+00> : vector<128xf32>
      %75 = vector.multi_reduction <add>, %74, %cst_34 [0] : vector<16x128xf32> to vector<128xf32>
      %76 = vector.shape_cast %75 : vector<128xf32> to vector<1x128xf32>
      %77 = arith.subf %76, %65 : vector<1x128xf32>
      %78 = math.log %70 : vector<1x128xf32>
      %79 = arith.subf %77, %78 : vector<1x128xf32>
      %c0_35 = arith.constant 0 : index
      %c0_36 = arith.constant 0 : index
      %80 = vector.load %arg8[%c0_35, %c0_36] : memref<1x128xf32, #tpu.memory_space<vmem>>, vector<1x128xf32>
      %81 = arith.select %53, %79, %80 : vector<1x128xi1>, vector<1x128xf32>
      %c0_37 = arith.constant 0 : index
      %c0_38 = arith.constant 0 : index
      %82 = vector.load %arg8[%c0_37, %c0_38] : memref<1x128xf32, #tpu.memory_space<vmem>>, vector<1x128xf32>
      tpu.vector_store %arg8[%c0_37, %c0_38], %81 {strides = array<i32>} : memref<1x128xf32, #tpu.memory_space<vmem>>, vector<1x128xf32>,
      %c0_39 = arith.constant 0 : index
      %c0_40 = arith.constant 0 : index
      %83 = vector.load %arg9[%c0_39, %c0_40] : memref<1x128xi32, #tpu.memory_space<vmem>>, vector<1x128xi32>
      %c17_i32 = arith.constant 17 : i32
      %84 = vector.broadcast %c17_i32 : i32 to vector<1x128xi32>
      %85 = arith.select %53, %84, %83 : vector<1x128xi1>, vector<1x128xi32>
      %c0_41 = arith.constant 0 : index
      %c0_42 = arith.constant 0 : index
      %86 = vector.load %arg9[%c0_41, %c0_42] : memref<1x128xi32, #tpu.memory_space<vmem>>, vector<1x128xi32>
      tpu.vector_store %arg9[%c0_41, %c0_42], %85 {strides = array<i32>} : memref<1x128xi32, #tpu.memory_space<vmem>>, vector<1x128xi32>,
    } else {
    }
    %c0_15 = arith.constant 0 : index
    %c0_16 = arith.constant 0 : index
    %24 = vector.load %arg9[%c0_15, %c0_16] : memref<1x128xi32, #tpu.memory_space<vmem>>, vector<1x128xi32>
    %25 = tpu.iota {dimensions = array<i32: 0>} : vector<128x128xi32>
    %c18_i32 = arith.constant 18 : i32
    %26 = vector.broadcast %c18_i32 : i32 to vector<128x128xi32>
    %27 = arith.cmpi slt, %25, %26 : vector<128x128xi32>
    %cst_17 = arith.constant -1.000000e+30 : f32
    %28 = vector.broadcast %cst_17 : f32 to vector<128x128xf32>
    %29 = arith.select %27, %4, %28 : vector<128x128xi1>, vector<128x128xf32>
    %cst_18 = arith.constant dense<0xFF800000> : vector<128xf32>
    %30 = vector.multi_reduction <maximumf>, %29, %cst_18 [0] : vector<128x128xf32> to vector<128xf32>
    %31 = vector.shape_cast %30 : vector<128xf32> to vector<1x128xf32>
    %32 = vector.broadcast %31 : vector<1x128xf32> to vector<128x128xf32>
    %33 = arith.subf %29, %32 : vector<128x128xf32>
    %34 = math.exp %33 : vector<128x128xf32>
    %cst_19 = arith.constant dense<0.000000e+00> : vector<128xf32>
    %35 = vector.multi_reduction <add>, %34, %cst_19 [0] : vector<128x128xf32> to vector<128xf32>
    %36 = vector.shape_cast %35 : vector<128xf32> to vector<1x128xf32>
    %37 = vector.broadcast %24 : vector<1x128xi32> to vector<128x128xi32>
    %38 = arith.cmpi eq, %25, %37 : vector<128x128xi32>
    %cst_20 = arith.constant 0.000000e+00 : f32
    %39 = vector.broadcast %cst_20 : f32 to vector<128x128xf32>
    %40 = arith.select %38, %29, %39 : vector<128x128xi1>, vector<128x128xf32>
    %cst_21 = arith.constant dense<0.000000e+00> : vector<128xf32>
    %41 = vector.multi_reduction <add>, %40, %cst_21 [0] : vector<128x128xf32> to vector<128xf32>
    %42 = vector.shape_cast %41 : vector<128xf32> to vector<1x128xf32>
    %43 = arith.subf %42, %31 : vector<1x128xf32>
    %44 = math.log %36 : vector<1x128xf32>
    %45 = arith.subf %43, %44 : vector<1x128xf32>
    %c0_22 = arith.constant 0 : index
    %c0_23 = arith.constant 0 : index
    %46 = vector.load %arg8[%c0_22, %c0_23] : memref<1x128xf32, #tpu.memory_space<vmem>>, vector<1x128xf32>
    %47 = arith.addf %46, %45 : vector<1x128xf32>
    %c0_24 = arith.constant 0 : index
    %c0_25 = arith.constant 0 : index
    %48 = vector.load %arg7[%c0_24, %c0_25] : memref<1x128xf32, #tpu.memory_space<vmem>>, vector<1x128xf32>
    tpu.vector_store %arg7[%c0_24, %c0_25], %47 {strides = array<i32>} : memref<1x128xf32, #tpu.memory_space<vmem>>, vector<1x128xf32>,
    return
  }
  func.func @transform_0(%arg0: i32, %arg1: memref<2xi32, #tpu.memory_space<smem>>) -> (i32, i32) {
    %c0_i32 = arith.constant 0 : i32
    %c0_i32_0 = arith.constant 0 : i32
    return %c0_i32, %arg0 : i32, i32
  }
  func.func @transform_1(%arg0: i32, %arg1: memref<2xi32, #tpu.memory_space<smem>>) -> (i32, i32) {
    %c0_i32 = arith.constant 0 : i32
    %c0_i32_0 = arith.constant 0 : i32
    return %c0_i32, %arg0 : i32, i32
  }
  func.func @transform_2(%arg0: i32, %arg1: memref<2xi32, #tpu.memory_space<smem>>) -> (i32, i32) {
    %c0_i32 = arith.constant 0 : i32
    %c0_i32_0 = arith.constant 0 : i32
    %c0_i32_1 = arith.constant 0 : i32
    return %c0_i32, %c0_i32_0 : i32, i32
  }
  func.func @transform_3(%arg0: i32, %arg1: memref<2xi32, #tpu.memory_space<smem>>) -> (i32, i32) {
    %c0_i32 = arith.constant 0 : i32
    %c0_i32_0 = arith.constant 0 : i32
    %c0_i32_1 = arith.constant 0 : i32
    return %c0_i32, %c0_i32_0 : i32, i32
  }
  func.func @transform_4(%arg0: i32, %arg1: memref<2xi32, #tpu.memory_space<smem>>) -> (i32, i32) {
    %c0_i32 = arith.constant 0 : i32
    %c0_i32_0 = arith.constant 0 : i32
    %c0_i32_1 = arith.constant 0 : i32
    return %c0_i32, %c0_i32_0 : i32, i32
  }
  func.func @transform_5(%arg0: i32, %arg1: memref<2xi32, #tpu.memory_space<smem>>) -> (i32, i32) {
    %c0_i32 = arith.constant 0 : i32
    %c0_i32_0 = arith.constant 0 : i32
    return %c0_i32, %arg0 : i32, i32
  }
}

</mosaic_0001>

<llo_original>
// kernel: tpu_custom_call.1
$region0: #{tpu_custom_call.1}
  #allocation0 [shape = 'u32[]', space=smem, size = 0x4, offset = 0x4, fixed_abs, tag = 'smem constant byte address 0x4 - core index']
  #allocation1 [shape = 'u32[72,128]{1,0:T(1,128)}', space=vmem, size = 0x9000, scoped, tag = 'internal scratch']
  #allocation2 [shape = 'f32[1,128]{1,0:T(1,128)}', space=vmem, size = 0x200, scoped, tag = 'scratch operand']
  #allocation3 [shape = 's32[1,128]{1,0:T(1,128)}', space=vmem, size = 0x200, scoped, tag = 'scratch operand']
  #allocation4 [shape = 's32[1]{0}', space=sflag, size = 0x4, scoped, tag = 'scoped memory for tpu_custom_call.1']
  #allocation5 [shape = 'u8[512]{0}', space=smem, size = 0x200, scoped, tag = 'prefetched SMEM operand 0']
  %s0 = inlined_call_operand.hbm [shape: s32[2], index: 0, kind: input, shape index: {}]
  %s1 = inlined_call_operand.hbm [shape: bf16[128,128], index: 1, kind: input, shape index: {}]
  %s2 = inlined_call_operand.vmem [shape: s32[1,128], index: 2, kind: input, shape index: {}]
  %s3 = inlined_call_operand.hbm [shape: bf16[384,128], index: 3, kind: input, shape index: {}]
  %s4 = inlined_call_operand.hbm [shape: bf16[16,128], index: 4, kind: input, shape index: {}]
  %s5 = inlined_call_operand.hbm [shape: bf16[16,128], index: 5, kind: input, shape index: {}]
  %s6 = inlined_call_operand.hbm [shape: f32[1,128], index: 6, kind: output, shape index: {}]
  %s7 = sld [smem:[#allocation0]]
  $region54: #{tpu_custom_call.1} parent=0
    _
  %s9 = ssub.s32 1, %s7
  %s10 = scalar_select 0, %s9, %s7
  %s12 = sshll.u32 %s0, 4
  %s13 = int_to_ptr.hbm [resolvable:$true] %s12
  %15 = dma.hbm_to_smem %s13, 16, [#allocation5], [#allocation4]
  %17 = dma.done [#allocation4], 16
  %18 = sfence
  $region1: #{tpu_custom_call.1} parent=0
    #allocation6 [shape = 'u8[32768]{0}', space=vmem, size = 0x8000, scoped, tag = 'input window, operand 1, single buffered']
    #allocation7 [shape = 's32[1]{0}', space=sflag, size = 0x4, scoped, tag = 'scoped memory for tpu_custom_call.1']
    #allocation8 [shape = 's32[1]{0}', space=sflag, size = 0x4, scoped, tag = 'scoped memory for tpu_custom_call.1']
    #allocation9 [shape = 'u8[98304]{0}', space=vmem, size = 0x18000, scoped, tag = 'input window, operand 3, single buffered']
    #allocation10 [shape = 's32[1]{0}', space=sflag, size = 0x4, scoped, tag = 'scoped memory for tpu_custom_call.1']
    #allocation11 [shape = 'u8[4096]{0}', space=vmem, size = 0x1000, scoped, tag = 'input window, operand 4, single buffered']
    #allocation12 [shape = 'u8[4096]{0}', space=vmem, size = 0x1000, scoped, tag = 'input window, operand 5, single buffered']
    #allocation13 [shape = 's32[1]{0}', space=sflag, size = 0x4, scoped, tag = 'scoped memory for tpu_custom_call.1']
    #allocation14 [shape = 'u8[512]{0}', space=vmem, size = 0x400, scoped, tag = 'output window, operand 0, single buffered']
    %19 = vsyncpa [#allocation7], 0
    %20 = vsyncpa [#allocation10], 0
    %21 = vsyncpa [#allocation13], 0
    %22 = vsyncpa [#allocation8], 0
    // Predicated region
    $region2: #{tpu_custom_call.1} parent=1 // pred_check
      _
    $region3: #{tpu_custom_call.1} parent=1 // pred_check_branch
      %24 = sbr.rel (0) target = $region5
    $region4: #{tpu_custom_call.1} parent=1 // pred_region
      %26 = vsyncadd [#allocation7], 0
      %s27 = sshll.u32 %s1, 4
      %s28 = int_to_ptr.hbm [resolvable:$true] %s27
      %s29 = sshll.u32 [#allocation6], 4
      %s30 = int_to_ptr.vmem [resolvable:$true] %s29
      %35 = dma.hbm_to_vmem [thread:$0]  %s28, 1024, %s30, [#allocation7], 64, 64, 4
    $region5: #{tpu_custom_call.1} parent=1 // pred_fallthru
      _
    // Predicated region
    $region6: #{tpu_custom_call.1} parent=1 // pred_check
      _
    $region7: #{tpu_custom_call.1} parent=1 // pred_check_branch
      %37 = sbr.rel (0) target = $region9
    $region8: #{tpu_custom_call.1} parent=1 // pred_region
      _
    $region9: #{tpu_custom_call.1} parent=1 // pred_fallthru
      _
    // Predicated region
    $region10: #{tpu_custom_call.1} parent=1 // pred_check
      _
    $region11: #{tpu_custom_call.1} parent=1 // pred_check_branch
      %39 = sbr.rel (0) target = $region13
    $region12: #{tpu_custom_call.1} parent=1 // pred_region
      %41 = vsyncadd [#allocation10], 0
      %s42 = sshll.u32 %s3, 4
      %s43 = int_to_ptr.hbm [resolvable:$true] %s42
      %s44 = sshll.u32 [#allocation9], 4
      %s45 = int_to_ptr.vmem [resolvable:$true] %s44
      %50 = dma.hbm_to_vmem [thread:$0]  %s43, 3072, %s45, [#allocation10], 64, 64, 4
    $region13: #{tpu_custom_call.1} parent=1 // pred_fallthru
      _
    // Predicated region
    $region14: #{tpu_custom_call.1} parent=1 // pred_check
      _
    $region15: #{tpu_custom_call.1} parent=1 // pred_check_branch
      %52 = sbr.rel (0) target = $region17
    $region16: #{tpu_custom_call.1} parent=1 // pred_region
      %54 = vsyncadd [#allocation10], 0
      %s55 = sshll.u32 %s4, 4
      %s56 = int_to_ptr.hbm [resolvable:$true] %s55
      %s57 = sshll.u32 [#allocation11], 4
      %s58 = int_to_ptr.vmem [resolvable:$true] %s57
      %63 = dma.hbm_to_vmem [thread:$0]  %s56, 128, %s58, [#allocation10], 64, 64, 4
    $region17: #{tpu_custom_call.1} parent=1 // pred_fallthru
      _
    // Predicated region
    $region18: #{tpu_custom_call.1} parent=1 // pred_check
      _
    $region19: #{tpu_custom_call.1} parent=1 // pred_check_branch
      %65 = sbr.rel (0) target = $region21
    $region20: #{tpu_custom_call.1} parent=1 // pred_region
      %67 = vsyncadd [#allocation13], 0
      %s68 = sshll.u32 %s5, 4
      %s69 = int_to_ptr.hbm [resolvable:$true] %s68
      %s70 = sshll.u32 [#allocation12], 4
      %s71 = int_to_ptr.vmem [resolvable:$true] %s70
      %76 = dma.hbm_to_vmem [thread:$0]  %s69, 128, %s71, [#allocation13], 64, 64, 4
    $region21: #{tpu_custom_call.1} parent=1 // pred_fallthru
      _
    // Predicated region
    $region22: #{tpu_custom_call.1} parent=1 // pred_check
      _
    $region23: #{tpu_custom_call.1} parent=1 // pred_check_branch
      %78 = sbr.rel (0) target = $region25
    $region24: #{tpu_custom_call.1} parent=1 // pred_region
      %80 = dma.done [#allocation7], 1024
    $region25: #{tpu_custom_call.1} parent=1 // pred_fallthru
      _
    // Predicated region
    $region26: #{tpu_custom_call.1} parent=1 // pred_check
      _
    $region27: #{tpu_custom_call.1} parent=1 // pred_check_branch
      %82 = sbr.rel (0) target = $region29
    $region28: #{tpu_custom_call.1} parent=1 // pred_region
      %84 = dma.done [#allocation10], 3072
    $region29: #{tpu_custom_call.1} parent=1 // pred_fallthru
      _
    // Predicated region
    $region30: #{tpu_custom_call.1} parent=1 // pred_check
      _
    $region31: #{tpu_custom_call.1} parent=1 // pred_check_branch
      %86 = sbr.rel (0) target = $region33
    $region32: #{tpu_custom_call.1} parent=1 // pred_region
      %88 = dma.done [#allocation10], 128
    $region33: #{tpu_custom_call.1} parent=1 // pred_fallthru
      _
    // Predicated region
    $region34: #{tpu_custom_call.1} parent=1 // pred_check
      _
    $region35: #{tpu_custom_call.1} parent=1 // pred_check_branch
      %90 = sbr.rel (0) target = $region37
    $region36: #{tpu_custom_call.1} parent=1 // pred_region
      %92 = dma.done [#allocation13], 128
    $region37: #{tpu_custom_call.1} parent=1 // pred_fallthru
      _
    %v93 = vld [vmem:[#allocation6] sm:$0xf]
    %v94 = vld [vmem:[#allocation6 + $0x4] sm:$0xf]
    %v95 = vld [vmem:[#allocation6 + $0x8] sm:$0xf]
    %v96 = vld [vmem:[#allocation6 + $0xc] sm:$0xf]
    %v97 = vld [vmem:[#allocation6 + $0x10] sm:$0xf]
    %v98 = vld [vmem:[#allocation6 + $0x14] sm:$0xf]
    %v99 = vld [vmem:[#allocation6 + $0x18] sm:$0xf]
    %v100 = vld [vmem:[#allocation6 + $0x1c] sm:$0xf]
    %v101 = vld [vmem:[#allocation6 + $0x20] sm:$0xf]
    %v102 = vld [vmem:[#allocation6 + $0x24] sm:$0xf]
    %v103 = vld [vmem:[#allocation6 + $0x28] sm:$0xf]
    %v104 = vld [vmem:[#allocation6 + $0x2c] sm:$0xf]
    %v105 = vld [vmem:[#allocation6 + $0x30] sm:$0xf]
    %v106 = vld [vmem:[#allocation6 + $0x34] sm:$0xf]
    %v107 = vld [vmem:[#allocation6 + $0x38] sm:$0xf]
    %v108 = vld [vmem:[#allocation6 + $0x3c] sm:$0xf]
    %v109 = vld [vmem:[%s2] sm:$0x1]
    %v110 = vld [vmem:[#allocation9] sm:$0xf]
    %v111 = vld [vmem:[#allocation9 + $0x4] sm:$0xf]
    %v112 = vld [vmem:[#allocation9 + $0x8] sm:$0xf]
    %v113 = vld [vmem:[#allocation9 + $0xc] sm:$0xf]
    %v114 = vld [vmem:[#allocation9 + $0x10] sm:$0xf]
    %v115 = vld [vmem:[#allocation9 + $0x14] sm:$0xf]
    %v116 = vld [vmem:[#allocation9 + $0x18] sm:$0xf]
    %v117 = vld [vmem:[#allocation9 + $0x1c] sm:$0xf]
    %v118 = vld [vmem:[#allocation9 + $0x20] sm:$0xf]
    %v119 = vld [vmem:[#allocation9 + $0x24] sm:$0xf]
    %v120 = vld [vmem:[#allocation9 + $0x28] sm:$0xf]
    %v121 = vld [vmem:[#allocation9 + $0x2c] sm:$0xf]
    %v122 = vld [vmem:[#allocation9 + $0x30] sm:$0xf]
    %v123 = vld [vmem:[#allocation9 + $0x34] sm:$0xf]
    %v124 = vld [vmem:[#allocation9 + $0x38] sm:$0xf]
    %v125 = vld [vmem:[#allocation9 + $0x3c] sm:$0xf]
    %v126 = vld [vmem:[#allocation9 + $0x40] sm:$0xf]
    %v127 = vld [vmem:[#allocation9 + $0x44] sm:$0xf]
    %v128 = vld [vmem:[#allocation9 + $0x48] sm:$0xf]
    %v129 = vld [vmem:[#allocation9 + $0x4c] sm:$0xf]
    %v130 = vld [vmem:[#allocation9 + $0x50] sm:$0xf]
    %v131 = vld [vmem:[#allocation9 + $0x54] sm:$0xf]
    %v132 = vld [vmem:[#allocation9 + $0x58] sm:$0xf]
    %v133 = vld [vmem:[#allocation9 + $0x5c] sm:$0xf]
    %v134 = vld [vmem:[#allocation9 + $0x60] sm:$0xf]
    %v135 = vld [vmem:[#allocation9 + $0x64] sm:$0xf]
    %v136 = vld [vmem:[#allocation9 + $0x68] sm:$0xf]
    %v137 = vld [vmem:[#allocation9 + $0x6c] sm:$0xf]
    %v138 = vld [vmem:[#allocation9 + $0x70] sm:$0xf]
    %v139 = vld [vmem:[#allocation9 + $0x74] sm:$0xf]
    %v140 = vld [vmem:[#allocation9 + $0x78] sm:$0xf]
    %v141 = vld [vmem:[#allocation9 + $0x7c] sm:$0xf]
    %v142 = vld [vmem:[#allocation9 + $0x80] sm:$0xf]
    %v143 = vld [vmem:[#allocation9 + $0x84] sm:$0xf]
    %v144 = vld [vmem:[#allocation9 + $0x88] sm:$0xf]
    %v145 = vld [vmem:[#allocation9 + $0x8c] sm:$0xf]
    %v146 = vld [vmem:[#allocation9 + $0x90] sm:$0xf]
    %v147 = vld [vmem:[#allocation9 + $0x94] sm:$0xf]
    %v148 = vld [vmem:[#allocation9 + $0x98] sm:$0xf]
    %v149 = vld [vmem:[#allocation9 + $0x9c] sm:$0xf]
    %v150 = vld [vmem:[#allocation9 + $0xa0] sm:$0xf]
    %v151 = vld [vmem:[#allocation9 + $0xa4] sm:$0xf]
    %v152 = vld [vmem:[#allocation9 + $0xa8] sm:$0xf]
    %v153 = vld [vmem:[#allocation9 + $0xac] sm:$0xf]
    %v154 = vld [vmem:[#allocation9 + $0xb0] sm:$0xf]
    %v155 = vld [vmem:[#allocation9 + $0xb4] sm:$0xf]
    %v156 = vld [vmem:[#allocation9 + $0xb8] sm:$0xf]
    %v157 = vld [vmem:[#allocation9 + $0xbc] sm:$0xf]
    %v206 = vunpack.c.l.b16 %v110
    %v207 = vunpack.c.l.b16 %v111
    %v208 = vunpack.c.l.b16 %v112
    %v209 = vunpack.c.l.b16 %v113
    %v210 = vunpack.c.l.b16 %v114
    %v211 = vunpack.c.l.b16 %v115
    %v212 = vunpack.c.l.b16 %v116
    %v213 = vunpack.c.l.b16 %v117
    %v214 = vunpack.c.l.b16 %v118
    %v215 = vunpack.c.l.b16 %v119
    %v216 = vunpack.c.l.b16 %v120
    %v217 = vunpack.c.l.b16 %v121
    %v218 = vunpack.c.l.b16 %v122
    %v219 = vunpack.c.l.b16 %v123
    %v220 = vunpack.c.l.b16 %v124
    %v221 = vunpack.c.l.b16 %v125
    %v222 = vunpack.c.l.b16 %v126
    %v223 = vunpack.c.l.b16 %v127
    %v224 = vunpack.c.l.b16 %v128
    %v225 = vunpack.c.l.b16 %v129
    %v226 = vunpack.c.l.b16 %v130
    %v227 = vunpack.c.l.b16 %v131
    %v228 = vunpack.c.l.b16 %v132
    %v229 = vunpack.c.l.b16 %v133
    %v230 = vunpack.c.l.b16 %v134
    %v231 = vunpack.c.l.b16 %v135
    %v232 = vunpack.c.l.b16 %v136
    %v233 = vunpack.c.l.b16 %v137
    %v234 = vunpack.c.l.b16 %v138
    %v235 = vunpack.c.l.b16 %v139
    %v236 = vunpack.c.l.b16 %v140
    %v237 = vunpack.c.l.b16 %v141
    %v238 = vunpack.c.l.b16 %v142
    %v239 = vunpack.c.l.b16 %v143
    %v240 = vunpack.c.l.b16 %v144
    %v241 = vunpack.c.l.b16 %v145
    %v242 = vunpack.c.l.b16 %v146
    %v243 = vunpack.c.l.b16 %v147
    %v244 = vunpack.c.l.b16 %v148
    %v245 = vunpack.c.l.b16 %v149
    %v246 = vunpack.c.l.b16 %v150
    %v247 = vunpack.c.l.b16 %v151
    %v248 = vunpack.c.l.b16 %v152
    %v249 = vunpack.c.l.b16 %v153
    %v250 = vunpack.c.l.b16 %v154
    %v251 = vunpack.c.l.b16 %v155
    %v252 = vunpack.c.l.b16 %v156
    %v253 = vunpack.c.l.b16 %v157
    %v254 = vpack.c.b16 %v207, %v206
    %v255 = vpack.c.b16 %v209, %v208
    %v256 = vpack.c.b16 %v211, %v210
    %v257 = vpack.c.b16 %v213, %v212
    %v258 = vpack.c.b16 %v215, %v214
    %v259 = vpack.c.b16 %v217, %v216
    %v260 = vpack.c.b16 %v219, %v218
    %v261 = vpack.c.b16 %v221, %v220
    %v262 = vpack.c.b16 %v223, %v222
    %v263 = vpack.c.b16 %v225, %v224
    %v264 = vpack.c.b16 %v227, %v226
    %v265 = vpack.c.b16 %v229, %v228
    %v266 = vpack.c.b16 %v231, %v230
    %v267 = vpack.c.b16 %v233, %v232
    %v268 = vpack.c.b16 %v235, %v234
    %v269 = vpack.c.b16 %v237, %v236
    %v270 = vpack.c.b16 %v239, %v238
    %v271 = vpack.c.b16 %v241, %v240
    %v272 = vpack.c.b16 %v243, %v242
    %v273 = vpack.c.b16 %v245, %v244
    %v274 = vpack.c.b16 %v247, %v246
    %v275 = vpack.c.b16 %v249, %v248
    %v276 = vpack.c.b16 %v251, %v250
    %v277 = vpack.c.b16 %v253, %v252
    %v318 = vunpack.c.l.b16 %v93
    %v319 = vunpack.c.l.b16 %v94
    %v320 = vunpack.c.l.b16 %v95
    %v321 = vunpack.c.l.b16 %v96
    %v322 = vunpack.c.l.b16 %v97
    %v323 = vunpack.c.l.b16 %v98
    %v324 = vunpack.c.l.b16 %v99
    %v325 = vunpack.c.l.b16 %v100
    %v326 = vunpack.c.l.b16 %v101
    %v327 = vunpack.c.l.b16 %v102
    %v328 = vunpack.c.l.b16 %v103
    %v329 = vunpack.c.l.b16 %v104
    %v330 = vunpack.c.l.b16 %v105
    %v331 = vunpack.c.l.b16 %v106
    %v332 = vunpack.c.l.b16 %v107
    %v333 = vunpack.c.l.b16 %v108
    %v334 = vpack.c.b16 %v319, %v318
    %v335 = vpack.c.b16 %v321, %v320
    %v336 = vpack.c.b16 %v323, %v322
    %v337 = vpack.c.b16 %v325, %v324
    %v338 = vpack.c.b16 %v327, %v326
    %v339 = vpack.c.b16 %v329, %v328
    %v340 = vpack.c.b16 %v331, %v330
    %v341 = vpack.c.b16 %v333, %v332
    %350 = vmatpush.bf16.msra.mxu0 %v341
    %351 = vmatpush.bf16.msra.mxu0 %v340
    %352 = vmatpush.bf16.msra.mxu0 %v339
    %353 = vmatpush.bf16.msra.mxu0 %v338
    %354 = vmatpush.bf16.msra.mxu0 %v337
    %355 = vmatpush.bf16.msra.mxu0 %v336
    %356 = vmatpush.bf16.msra.mxu0 %v335
    %357 = vmatpush.bf16.msra.mxu0 %v334
    %358 = vmatmul.bf16.gmra.mxu0 %v254
    %v359 = vpop.f32.mrf.mxu0
    %v360 = vadd.f32 0.0, %v359
    %v361 = vpop.f32.mrf.mxu0
    %v362 = vadd.f32 0.0, %v361
    %363 = vmatmul.bf16.gmra.mxu0 %v255
    %v364 = vpop.f32.mrf.mxu0
    %v365 = vadd.f32 0.0, %v364
    %v366 = vpop.f32.mrf.mxu0
    %v367 = vadd.f32 0.0, %v366
    %368 = vmatmul.bf16.gmra.mxu0 %v256
    %v369 = vpop.f32.mrf.mxu0
    %v370 = vadd.f32 0.0, %v369
    %v371 = vpop.f32.mrf.mxu0
    %v372 = vadd.f32 0.0, %v371
    %373 = vmatmul.bf16.gmra.mxu0 %v257
    %v374 = vpop.f32.mrf.mxu0
    %v375 = vadd.f32 0.0, %v374
    %v376 = vpop.f32.mrf.mxu0
    %v377 = vadd.f32 0.0, %v376
    %378 = vmatmul.bf16.gmra.mxu0 %v258
    %v379 = vpop.f32.mrf.mxu0
    %v380 = vadd.f32 0.0, %v379
    %v381 = vpop.f32.mrf.mxu0
    %v382 = vadd.f32 0.0, %v381
    %383 = vmatmul.bf16.gmra.mxu0 %v259
    %v384 = vpop.f32.mrf.mxu0
    %v385 = vadd.f32 0.0, %v384
    %v386 = vpop.f32.mrf.mxu0
    %v387 = vadd.f32 0.0, %v386
    %388 = vmatmul.bf16.gmra.mxu0 %v260
    %v389 = vpop.f32.mrf.mxu0
    %v390 = vadd.f32 0.0, %v389
    %v391 = vpop.f32.mrf.mxu0
    %v392 = vadd.f32 0.0, %v391
    %393 = vmatmul.bf16.gmra.mxu0 %v261
    %v394 = vpop.f32.mrf.mxu0
    %v395 = vadd.f32 0.0, %v394
    %v396 = vpop.f32.mrf.mxu0
    %v397 = vadd.f32 0.0, %v396
    %398 = vmatmul.bf16.gmra.mxu0 %v262
    %v399 = vpop.f32.mrf.mxu0
    %v400 = vadd.f32 0.0, %v399
    %v401 = vpop.f32.mrf.mxu0
    %v402 = vadd.f32 0.0, %v401
    %403 = vmatmul.bf16.gmra.mxu0 %v263
    %v404 = vpop.f32.mrf.mxu0
    %v405 = vadd.f32 0.0, %v404
    %v406 = vpop.f32.mrf.mxu0
    %v407 = vadd.f32 0.0, %v406
    %408 = vmatmul.bf16.gmra.mxu0 %v264
    %v409 = vpop.f32.mrf.mxu0
    %v410 = vadd.f32 0.0, %v409
    %v411 = vpop.f32.mrf.mxu0
    %v412 = vadd.f32 0.0, %v411
    %413 = vmatmul.bf16.gmra.mxu0 %v265
    %v414 = vpop.f32.mrf.mxu0
    %v415 = vadd.f32 0.0, %v414
    %v416 = vpop.f32.mrf.mxu0
    %v417 = vadd.f32 0.0, %v416
    %418 = vmatmul.bf16.gmra.mxu0 %v266
    %v419 = vpop.f32.mrf.mxu0
    %v420 = vadd.f32 0.0, %v419
    %v421 = vpop.f32.mrf.mxu0
    %v422 = vadd.f32 0.0, %v421
    %423 = vmatmul.bf16.gmra.mxu0 %v267
    %v424 = vpop.f32.mrf.mxu0
    %v425 = vadd.f32 0.0, %v424
    %v426 = vpop.f32.mrf.mxu0
    %v427 = vadd.f32 0.0, %v426
    %428 = vmatmul.bf16.gmra.mxu0 %v268
    %v429 = vpop.f32.mrf.mxu0
    %v430 = vadd.f32 0.0, %v429
    %v431 = vpop.f32.mrf.mxu0
    %v432 = vadd.f32 0.0, %v431
    %433 = vmatmul.bf16.gmra.mxu0 %v269
    %v434 = vpop.f32.mrf.mxu0
    %v435 = vadd.f32 0.0, %v434
    %v436 = vpop.f32.mrf.mxu0
    %v437 = vadd.f32 0.0, %v436
    %438 = vmatmul.bf16.gmra.mxu0 %v270
    %v439 = vpop.f32.mrf.mxu0
    %v440 = vadd.f32 0.0, %v439
    %v441 = vpop.f32.mrf.mxu0
    %v442 = vadd.f32 0.0, %v441
    %443 = vmatmul.bf16.gmra.mxu0 %v271
    %v444 = vpop.f32.mrf.mxu0
    %v445 = vadd.f32 0.0, %v444
    %v446 = vpop.f32.mrf.mxu0
    %v447 = vadd.f32 0.0, %v446
    %448 = vmatmul.bf16.gmra.mxu0 %v272
    %v449 = vpop.f32.mrf.mxu0
    %v450 = vadd.f32 0.0, %v449
    %v451 = vpop.f32.mrf.mxu0
    %v452 = vadd.f32 0.0, %v451
    %453 = vmatmul.bf16.gmra.mxu0 %v273
    %v454 = vpop.f32.mrf.mxu0
    %v455 = vadd.f32 0.0, %v454
    %v456 = vpop.f32.mrf.mxu0
    %v457 = vadd.f32 0.0, %v456
    %458 = vmatmul.bf16.gmra.mxu0 %v274
    %v459 = vpop.f32.mrf.mxu0
    %v460 = vadd.f32 0.0, %v459
    %v461 = vpop.f32.mrf.mxu0
    %v462 = vadd.f32 0.0, %v461
    %463 = vmatmul.bf16.gmra.mxu0 %v275
    %v464 = vpop.f32.mrf.mxu0
    %v465 = vadd.f32 0.0, %v464
    %v466 = vpop.f32.mrf.mxu0
    %v467 = vadd.f32 0.0, %v466
    %468 = vmatmul.bf16.gmra.mxu0 %v276
    %v469 = vpop.f32.mrf.mxu0
    %v470 = vadd.f32 0.0, %v469
    %v471 = vpop.f32.mrf.mxu0
    %v472 = vadd.f32 0.0, %v471
    %473 = vmatmul.bf16.gmra.mxu0 %v277
    %v474 = vpop.f32.mrf.mxu0
    %v475 = vadd.f32 0.0, %v474
    %v476 = vpop.f32.mrf.mxu0
    %v477 = vadd.f32 0.0, %v476
    %478 = vdwg.mxu0
    %v479 = vpack.c.bf16 %v400, %v400
    %v480 = vpack.c.bf16 %v402, %v402
    %v481 = vpack.c.bf16 %v405, %v405
    %v482 = vpack.c.bf16 %v407, %v407
    %v483 = vpack.c.bf16 %v410, %v410
    %v484 = vpack.c.bf16 %v412, %v412
    %v485 = vpack.c.bf16 %v415, %v415
    %v486 = vpack.c.bf16 %v417, %v417
    %v487 = vpack.c.bf16 %v420, %v420
    %v488 = vpack.c.bf16 %v422, %v422
    %v489 = vpack.c.bf16 %v425, %v425
    %v490 = vpack.c.bf16 %v427, %v427
    %v491 = vpack.c.bf16 %v430, %v430
    %v492 = vpack.c.bf16 %v432, %v432
    %v493 = vpack.c.bf16 %v435, %v435
    %v494 = vpack.c.bf16 %v437, %v437
    %v495 = vpack.c.bf16 %v440, %v440
    %v496 = vpack.c.bf16 %v442, %v442
    %v497 = vpack.c.bf16 %v445, %v445
    %v498 = vpack.c.bf16 %v447, %v447
    %v499 = vpack.c.bf16 %v450, %v450
    %v500 = vpack.c.bf16 %v452, %v452
    %v501 = vpack.c.bf16 %v455, %v455
    %v502 = vpack.c.bf16 %v457, %v457
    %v503 = vpack.c.bf16 %v460, %v460
    %v504 = vpack.c.bf16 %v462, %v462
    %v505 = vpack.c.bf16 %v465, %v465
    %v506 = vpack.c.bf16 %v467, %v467
    %v507 = vpack.c.bf16 %v470, %v470
    %v508 = vpack.c.bf16 %v472, %v472
    %v509 = vpack.c.bf16 %v475, %v475
    %v510 = vpack.c.bf16 %v477, %v477
    %511 = vst [vmem:[#allocation2] sm:$0x1] 0.0
    %512 = vst [vmem:[#allocation3] sm:$0x1] %v109
    %s513 = smul.u32 0, 2
    %s514 = sld [smem:[#allocation5 + %s513]]
    %p515 = scmp.gt.s32.totalorder %s514, 0
    // Predicated region
    $region38: #{tpu_custom_call.1} parent=1 // pred_check
      %p516 = pneg %p515
    $region39: #{tpu_custom_call.1} parent=1 // pred_check_branch
      %518 = sbr.rel (%p516) target = $region41
    $region40: #{tpu_custom_call.1} parent=1 // pred_region
      %vm519 = vcmp.ge.s32.totalorder %v109, 16
      %vm520 = vcmp.lt.s32.totalorder %v109, 32
      %vm521 = vmand %vm519, %vm520
      %v522 = vsub.s32 %v109, 16
      %vm523 = vcmp.gt.s32.totalorder %v522, 0
      %v524 = vsel %vm523, %v522, 0
      %vm525 = vcmp.lt.s32.totalorder %v524, 15
      %v526 = vsel %vm525, %v524, 15
      %v527 = vld [vmem:[#allocation11] sm:$0xf]
      %v528 = vld [vmem:[#allocation11 + $0x4] sm:$0xf]
      %v531 = vunpack.c.l.b16 %v527
      %v532 = vunpack.c.l.b16 %v528
      %v533 = vpack.c.b16 %v532, %v531
      %v551 = vunpack.c.l.b16 %v479
      %v552 = vunpack.c.l.b16 %v480
      %v553 = vunpack.c.l.b16 %v481
      %v554 = vunpack.c.l.b16 %v482
      %v555 = vunpack.c.l.b16 %v483
      %v556 = vunpack.c.l.b16 %v484
      %v557 = vunpack.c.l.b16 %v485
      %v558 = vunpack.c.l.b16 %v486
      %v559 = vunpack.c.l.b16 %v487
      %v560 = vunpack.c.l.b16 %v488
      %v561 = vunpack.c.l.b16 %v489
      %v562 = vunpack.c.l.b16 %v490
      %v563 = vunpack.c.l.b16 %v491
      %v564 = vunpack.c.l.b16 %v492
      %v565 = vunpack.c.l.b16 %v493
      %v566 = vunpack.c.l.b16 %v494
      %v567 = vpack.c.b16 %v552, %v551
      %v568 = vpack.c.b16 %v554, %v553
      %v569 = vpack.c.b16 %v556, %v555
      %v570 = vpack.c.b16 %v558, %v557
      %v571 = vpack.c.b16 %v560, %v559
      %v572 = vpack.c.b16 %v562, %v561
      %v573 = vpack.c.b16 %v564, %v563
      %v574 = vpack.c.b16 %v566, %v565
      %583 = vmatpush.bf16.msra.mxu0 %v574
      %584 = vmatpush.bf16.msra.mxu0 %v573
      %585 = vmatpush.bf16.msra.mxu0 %v572
      %586 = vmatpush.bf16.msra.mxu0 %v571
      %587 = vmatpush.bf16.msra.mxu0 %v570
      %588 = vmatpush.bf16.msra.mxu0 %v569
      %589 = vmatpush.bf16.msra.mxu0 %v568
      %590 = vmatpush.bf16.msra.mxu0 %v567
      %591 = vmatmul.bf16.gmra.mxu0 %v533
      %v592 = vpop.f32.mrf.mxu0
      %v593 = vadd.f32 0.0, %v592
      %v594 = vpop.f32.mrf.mxu0
      %v595 = vadd.f32 0.0, %v594
      %596 = vdwg.mxu0
      %v597 = vlaneseq
      %v598 = vshrl.u32 %v597, 7
      %v599 = vadd.s32 %v598, 8
      %v600 = vmax.f32 %v593, %v595
      %v601 = vrot.slane %v600, 4
      %v602 = vmax.f32 %v600, %v601
      %v603 = vrot.slane %v602, 2
      %v604 = vmax.f32 %v602, %v603
      %v605 = vrot.slane %v604, 1
      %v606 = vmax.f32 %v604, %v605
      %v607 = vsub.f32 %v593, %v606
      %v608 = vsub.f32 %v595, %v606
      %v609 = vmul.f32 %v607, 1.442695
      %v610 = vpow.pop %v609
      %v611 = vmul.f32 %v608, 1.442695
      %v612 = vpow.pop %v611
      %v613 = vadd.f32 %v610, %v612
      %v614 = vrot.slane %v613, 4
      %v615 = vadd.f32 %v613, %v614
      %v616 = vrot.slane %v615, 2
      %v617 = vadd.f32 %v615, %v616
      %v618 = vrot.slane %v617, 1
      %v619 = vadd.f32 %v617, %v618
      %v620 = vperm.slane %v526, 0
      %vm621 = vcmp.eq.s32.totalorder %v598, %v620
      %vm622 = vcmp.eq.s32.totalorder %v599, %v620
      %v623 = vsel %vm621, %v593, 0.0
      %v624 = vsel %vm622, %v595, 0.0
      %v625 = vadd.f32 %v623, %v624
      %v626 = vrot.slane %v625, 4
      %v627 = vadd.f32 %v625, %v626
      %v628 = vrot.slane %v627, 2
      %v629 = vadd.f32 %v627, %v628
      %v630 = vrot.slane %v629, 1
      %v631 = vadd.f32 %v629, %v630
      %v632 = vsub.f32 %v631, %v606
      %v633 = vlog2.pop %v619
      %v634 = vmul.f32 %v633, 0.6931472
      %v635 = vsub.f32 %v632, %v634
      %v636 = vld [vmem:[#allocation2] sm:$0x1]
      %v637 = vsel %vm521, %v635, %v636
      %638 = vst [vmem:[#allocation2] sm:$0x1] %v637
      %v639 = vld [vmem:[#allocation3] sm:$0x1]
      %v640 = vsel %vm521, 16, %v639
      %641 = vst [vmem:[#allocation3] sm:$0x1] %v640
    $region41: #{tpu_custom_call.1} parent=1 // pred_fallthru
      _
    %s642 = sadd.s32 %s513, 1
    %s643 = sld [smem:[#allocation5 + %s642]]
    %p644 = scmp.gt.s32.totalorder %s643, 0
    // Predicated region
    $region42: #{tpu_custom_call.1} parent=1 // pred_check
      %p645 = pneg %p644
    $region43: #{tpu_custom_call.1} parent=1 // pred_check_branch
      %647 = sbr.rel (%p645) target = $region45
    $region44: #{tpu_custom_call.1} parent=1 // pred_region
      %vm648 = vcmp.ge.s32.totalorder %v109, 32
      %vm649 = vcmp.lt.s32.totalorder %v109, 48
      %vm650 = vmand %vm648, %vm649
      %v651 = vsub.s32 %v109, 32
      %vm652 = vcmp.gt.s32.totalorder %v651, 0
      %v653 = vsel %vm652, %v651, 0
      %vm654 = vcmp.lt.s32.totalorder %v653, 15
      %v655 = vsel %vm654, %v653, 15
      %v656 = vld [vmem:[#allocation12] sm:$0xf]
      %v657 = vld [vmem:[#allocation12 + $0x4] sm:$0xf]
      %v660 = vunpack.c.l.b16 %v656
      %v661 = vunpack.c.l.b16 %v657
      %v662 = vpack.c.b16 %v661, %v660
      %v680 = vunpack.c.l.b16 %v495
      %v681 = vunpack.c.l.b16 %v496
      %v682 = vunpack.c.l.b16 %v497
      %v683 = vunpack.c.l.b16 %v498
      %v684 = vunpack.c.l.b16 %v499
      %v685 = vunpack.c.l.b16 %v500
      %v686 = vunpack.c.l.b16 %v501
      %v687 = vunpack.c.l.b16 %v502
      %v688 = vunpack.c.l.b16 %v503
      %v689 = vunpack.c.l.b16 %v504
      %v690 = vunpack.c.l.b16 %v505
      %v691 = vunpack.c.l.b16 %v506
      %v692 = vunpack.c.l.b16 %v507
      %v693 = vunpack.c.l.b16 %v508
      %v694 = vunpack.c.l.b16 %v509
      %v695 = vunpack.c.l.b16 %v510
      %v696 = vpack.c.b16 %v681, %v680
      %v697 = vpack.c.b16 %v683, %v682
      %v698 = vpack.c.b16 %v685, %v684
      %v699 = vpack.c.b16 %v687, %v686
      %v700 = vpack.c.b16 %v689, %v688
      %v701 = vpack.c.b16 %v691, %v690
      %v702 = vpack.c.b16 %v693, %v692
      %v703 = vpack.c.b16 %v695, %v694
      %712 = vmatpush.bf16.msra.mxu0 %v703
      %713 = vmatpush.bf16.msra.mxu0 %v702
      %714 = vmatpush.bf16.msra.mxu0 %v701
      %715 = vmatpush.bf16.msra.mxu0 %v700
      %716 = vmatpush.bf16.msra.mxu0 %v699
      %717 = vmatpush.bf16.msra.mxu0 %v698
      %718 = vmatpush.bf16.msra.mxu0 %v697
      %719 = vmatpush.bf16.msra.mxu0 %v696
      %720 = vmatmul.bf16.gmra.mxu0 %v662
      %v721 = vpop.f32.mrf.mxu0
      %v722 = vadd.f32 0.0, %v721
      %v723 = vpop.f32.mrf.mxu0
      %v724 = vadd.f32 0.0, %v723
      %725 = vdwg.mxu0
      %v726 = vlaneseq
      %v727 = vshrl.u32 %v726, 7
      %v728 = vadd.s32 %v727, 8
      %v729 = vmax.f32 %v722, %v724
      %v730 = vrot.slane %v729, 4
      %v731 = vmax.f32 %v729, %v730
      %v732 = vrot.slane %v731, 2
      %v733 = vmax.f32 %v731, %v732
      %v734 = vrot.slane %v733, 1
      %v735 = vmax.f32 %v733, %v734
      %v736 = vsub.f32 %v722, %v735
      %v737 = vsub.f32 %v724, %v735
      %v738 = vmul.f32 %v736, 1.442695
      %v739 = vpow.pop %v738
      %v740 = vmul.f32 %v737, 1.442695
      %v741 = vpow.pop %v740
      %v742 = vadd.f32 %v739, %v741
      %v743 = vrot.slane %v742, 4
      %v744 = vadd.f32 %v742, %v743
      %v745 = vrot.slane %v744, 2
      %v746 = vadd.f32 %v744, %v745
      %v747 = vrot.slane %v746, 1
      %v748 = vadd.f32 %v746, %v747
      %v749 = vperm.slane %v655, 0
      %vm750 = vcmp.eq.s32.totalorder %v727, %v749
      %vm751 = vcmp.eq.s32.totalorder %v728, %v749
      %v752 = vsel %vm750, %v722, 0.0
      %v753 = vsel %vm751, %v724, 0.0
      %v754 = vadd.f32 %v752, %v753
      %v755 = vrot.slane %v754, 4
      %v756 = vadd.f32 %v754, %v755
      %v757 = vrot.slane %v756, 2
      %v758 = vadd.f32 %v756, %v757
      %v759 = vrot.slane %v758, 1
      %v760 = vadd.f32 %v758, %v759
      %v761 = vsub.f32 %v760, %v735
      %v762 = vlog2.pop %v748
      %v763 = vmul.f32 %v762, 0.6931472
      %v764 = vsub.f32 %v761, %v763
      %v765 = vld [vmem:[#allocation2] sm:$0x1]
      %v766 = vsel %vm650, %v764, %v765
      %767 = vst [vmem:[#allocation2] sm:$0x1] %v766
      %v768 = vld [vmem:[#allocation3] sm:$0x1]
      %v769 = vsel %vm650, 17, %v768
      %770 = vst [vmem:[#allocation3] sm:$0x1] %v769
    $region45: #{tpu_custom_call.1} parent=1 // pred_fallthru
      _
    %v771 = vld [vmem:[#allocation3] sm:$0x1]
    %v772 = vlaneseq
    %v773 = vshrl.u32 %v772, 7
    %v774 = vadd.s32 %v773, 8
    %v775 = vadd.s32 %v773, 16
    %v776 = vadd.s32 %v773, 24
    %v777 = vadd.s32 %v773, 32
    %v778 = vadd.s32 %v773, 40
    %v779 = vadd.s32 %v773, 48
    %v780 = vadd.s32 %v773, 56
    %v781 = vadd.s32 %v773, 64
    %v782 = vadd.s32 %v773, 72
    %v783 = vadd.s32 %v773, 80
    %v784 = vadd.s32 %v773, 88
    %v785 = vadd.s32 %v773, 96
    %v786 = vadd.s32 %v773, 104
    %v787 = vadd.s32 %v773, 112
    %v788 = vadd.s32 %v773, 120
    %vm789 = vcmp.lt.s32.totalorder %v773, 18
    %vm790 = vcmp.lt.s32.totalorder %v774, 18
    %vm791 = vcmp.lt.s32.totalorder %v775, 18
    %vm792 = vcmp.lt.s32.totalorder %v776, 18
    %vm793 = vcmp.lt.s32.totalorder %v777, 18
    %vm794 = vcmp.lt.s32.totalorder %v778, 18
    %vm795 = vcmp.lt.s32.totalorder %v779, 18
    %vm796 = vcmp.lt.s32.totalorder %v780, 18
    %vm797 = vcmp.lt.s32.totalorder %v781, 18
    %vm798 = vcmp.lt.s32.totalorder %v782, 18
    %vm799 = vcmp.lt.s32.totalorder %v783, 18
    %vm800 = vcmp.lt.s32.totalorder %v784, 18
    %vm801 = vcmp.lt.s32.totalorder %v785, 18
    %vm802 = vcmp.lt.s32.totalorder %v786, 18
    %vm803 = vcmp.lt.s32.totalorder %v787, 18
    %vm804 = vcmp.lt.s32.totalorder %v788, 18
    %v805 = vsel %vm789, %v360, -1e+30
    %v806 = vsel %vm790, %v362, -1e+30
    %v807 = vsel %vm791, %v365, -1e+30
    %v808 = vsel %vm792, %v367, -1e+30
    %v809 = vsel %vm793, %v370, -1e+30
    %v810 = vsel %vm794, %v372, -1e+30
    %v811 = vsel %vm795, %v375, -1e+30
    %v812 = vsel %vm796, %v377, -1e+30
    %v813 = vsel %vm797, %v380, -1e+30
    %v814 = vsel %vm798, %v382, -1e+30
    %v815 = vsel %vm799, %v385, -1e+30
    %v816 = vsel %vm800, %v387, -1e+30
    %v817 = vsel %vm801, %v390, -1e+30
    %v818 = vsel %vm802, %v392, -1e+30
    %v819 = vsel %vm803, %v395, -1e+30
    %v820 = vsel %vm804, %v397, -1e+30
    %v821 = vmax.f32 %v805, %v809
    %v822 = vmax.f32 %v806, %v810
    %v823 = vmax.f32 %v807, %v811
    %v824 = vmax.f32 %v808, %v812
    %v825 = vmax.f32 %v821, %v813
    %v826 = vmax.f32 %v822, %v814
    %v827 = vmax.f32 %v823, %v815
    %v828 = vmax.f32 %v824, %v816
    %v829 = vmax.f32 %v825, %v817
    %v830 = vmax.f32 %v826, %v818
    %v831 = vmax.f32 %v827, %v819
    %v832 = vmax.f32 %v828, %v820
    %v833 = vmax.f32 %v829, %v830
    %v834 = vmax.f32 %v831, %v832
    %v835 = vmax.f32 %v833, %v834
    %v836 = vrot.slane %v835, 4
    %v837 = vmax.f32 %v835, %v836
    %v838 = vrot.slane %v837, 2
    %v839 = vmax.f32 %v837, %v838
    %v840 = vrot.slane %v839, 1
    %v841 = vmax.f32 %v839, %v840
    %v842 = vsub.f32 %v805, %v841
    %v843 = vsub.f32 %v806, %v841
    %v844 = vsub.f32 %v807, %v841
    %v845 = vsub.f32 %v808, %v841
    %v846 = vsub.f32 %v809, %v841
    %v847 = vsub.f32 %v810, %v841
    %v848 = vsub.f32 %v811, %v841
    %v849 = vsub.f32 %v812, %v841
    %v850 = vsub.f32 %v813, %v841
    %v851 = vsub.f32 %v814, %v841
    %v852 = vsub.f32 %v815, %v841
    %v853 = vsub.f32 %v816, %v841
    %v854 = vsub.f32 %v817, %v841
    %v855 = vsub.f32 %v818, %v841
    %v856 = vsub.f32 %v819, %v841
    %v857 = vsub.f32 %v820, %v841
    %v858 = vmul.f32 %v842, 1.442695
    %v859 = vpow.pop %v858
    %v860 = vmul.f32 %v843, 1.442695
    %v861 = vpow.pop %v860
    %v862 = vmul.f32 %v844, 1.442695
    %v863 = vpow.pop %v862
    %v864 = vmul.f32 %v845, 1.442695
    %v865 = vpow.pop %v864
    %v866 = vmul.f32 %v846, 1.442695
    %v867 = vpow.pop %v866
    %v868 = vmul.f32 %v847, 1.442695
    %v869 = vpow.pop %v868
    %v870 = vmul.f32 %v848, 1.442695
    %v871 = vpow.pop %v870
    %v872 = vmul.f32 %v849, 1.442695
    %v873 = vpow.pop %v872
    %v874 = vmul.f32 %v850, 1.442695
    %v875 = vpow.pop %v874
    %v876 = vmul.f32 %v851, 1.442695
    %v877 = vpow.pop %v876
    %v878 = vmul.f32 %v852, 1.442695
    %v879 = vpow.pop %v878
    %v880 = vmul.f32 %v853, 1.442695
    %v881 = vpow.pop %v880
    %v882 = vmul.f32 %v854, 1.442695
    %v883 = vpow.pop %v882
    %v884 = vmul.f32 %v855, 1.442695
    %v885 = vpow.pop %v884
    %v886 = vmul.f32 %v856, 1.442695
    %v887 = vpow.pop %v886
    %v888 = vmul.f32 %v857, 1.442695
    %v889 = vpow.pop %v888
    %v890 = vadd.f32 %v859, %v861
    %v891 = vadd.f32 %v890, %v863
    %v892 = vadd.f32 %v891, %v865
    %v893 = vadd.f32 %v892, %v867
    %v894 = vadd.f32 %v893, %v869
    %v895 = vadd.f32 %v894, %v871
    %v896 = vadd.f32 %v895, %v873
    %v897 = vadd.f32 %v896, %v875
    %v898 = vadd.f32 %v897, %v877
    %v899 = vadd.f32 %v898, %v879
    %v900 = vadd.f32 %v899, %v881
    %v901 = vadd.f32 %v900, %v883
    %v902 = vadd.f32 %v901, %v885
    %v903 = vadd.f32 %v902, %v887
    %v904 = vadd.f32 %v903, %v889
    %v905 = vrot.slane %v904, 4
    %v906 = vadd.f32 %v904, %v905
    %v907 = vrot.slane %v906, 2
    %v908 = vadd.f32 %v906, %v907
    %v909 = vrot.slane %v908, 1
    %v910 = vadd.f32 %v908, %v909
    %v911 = vperm.slane %v771, 0
    %vm912 = vcmp.eq.s32.totalorder %v773, %v911
    %vm913 = vcmp.eq.s32.totalorder %v774, %v911
    %vm914 = vcmp.eq.s32.totalorder %v775, %v911
    %vm915 = vcmp.eq.s32.totalorder %v776, %v911
    %vm916 = vcmp.eq.s32.totalorder %v777, %v911
    %vm917 = vcmp.eq.s32.totalorder %v778, %v911
    %vm918 = vcmp.eq.s32.totalorder %v779, %v911
    %vm919 = vcmp.eq.s32.totalorder %v780, %v911
    %vm920 = vcmp.eq.s32.totalorder %v781, %v911
    %vm921 = vcmp.eq.s32.totalorder %v782, %v911
    %vm922 = vcmp.eq.s32.totalorder %v783, %v911
    %vm923 = vcmp.eq.s32.totalorder %v784, %v911
    %vm924 = vcmp.eq.s32.totalorder %v785, %v911
    %vm925 = vcmp.eq.s32.totalorder %v786, %v911
    %vm926 = vcmp.eq.s32.totalorder %v787, %v911
    %vm927 = vcmp.eq.s32.totalorder %v788, %v911
    %v928 = vsel %vm912, %v805, 0.0
    %v929 = vsel %vm913, %v806, 0.0
    %v930 = vsel %vm914, %v807, 0.0
    %v931 = vsel %vm915, %v808, 0.0
    %v932 = vsel %vm916, %v809, 0.0
    %v933 = vsel %vm917, %v810, 0.0
    %v934 = vsel %vm918, %v811, 0.0
    %v935 = vsel %vm919, %v812, 0.0
    %v936 = vsel %vm920, %v813, 0.0
    %v937 = vsel %vm921, %v814, 0.0
    %v938 = vsel %vm922, %v815, 0.0
    %v939 = vsel %vm923, %v816, 0.0
    %v940 = vsel %vm924, %v817, 0.0
    %v941 = vsel %vm925, %v818, 0.0
    %v942 = vsel %vm926, %v819, 0.0
    %v943 = vsel %vm927, %v820, 0.0
    %v944 = vadd.f32 %v928, %v929
    %v945 = vadd.f32 %v944, %v930
    %v946 = vadd.f32 %v945, %v931
    %v947 = vadd.f32 %v946, %v932
    %v948 = vadd.f32 %v947, %v933
    %v949 = vadd.f32 %v948, %v934
    %v950 = vadd.f32 %v949, %v935
    %v951 = vadd.f32 %v950, %v936
    %v952 = vadd.f32 %v951, %v937
    %v953 = vadd.f32 %v952, %v938
    %v954 = vadd.f32 %v953, %v939
    %v955 = vadd.f32 %v954, %v940
    %v956 = vadd.f32 %v955, %v941
    %v957 = vadd.f32 %v956, %v942
    %v958 = vadd.f32 %v957, %v943
    %v959 = vrot.slane %v958, 4
    %v960 = vadd.f32 %v958, %v959
    %v961 = vrot.slane %v960, 2
    %v962 = vadd.f32 %v960, %v961
    %v963 = vrot.slane %v962, 1
    %v964 = vadd.f32 %v962, %v963
    %v965 = vsub.f32 %v964, %v841
    %v966 = vlog2.pop %v910
    %v967 = vmul.f32 %v966, 0.6931472
    %v968 = vsub.f32 %v965, %v967
    %v969 = vld [vmem:[#allocation2] sm:$0x1]
    %v970 = vadd.f32 %v969, %v968
    %971 = vst [vmem:[#allocation14] sm:$0x1] %v970
    // Predicated region
    $region46: #{tpu_custom_call.1} parent=1 // pred_check
      _
    $region47: #{tpu_custom_call.1} parent=1 // pred_check_branch
      %973 = sbr.rel (0) target = $region49
    $region48: #{tpu_custom_call.1} parent=1 // pred_region
      %975 = vsyncadd [#allocation8], 0
      %s977 = sshll.u32 [#allocation14], 4
      %s978 = int_to_ptr.vmem [resolvable:$true] %s977
      %s979 = sshll.u32 %s6, 4
      %s980 = int_to_ptr.hbm [resolvable:$true] %s979
      %982 = dma.vmem_to_hbm [thread:$0]  %s978, 16, %s980, [#allocation8]
    $region49: #{tpu_custom_call.1} parent=1 // pred_fallthru
      _
    // Predicated region
    $region50: #{tpu_custom_call.1} parent=1 // pred_check
      _
    $region51: #{tpu_custom_call.1} parent=1 // pred_check_branch
      %984 = sbr.rel (0) target = $region53
    $region52: #{tpu_custom_call.1} parent=1 // pred_region
      %986 = dma.done [#allocation8], 16
    $region53: #{tpu_custom_call.1} parent=1 // pred_fallthru
      _
    %987 = vsyncpa [#allocation7], 1
    %988 = vsyncpa [#allocation10], 1
    %989 = vsyncpa [#allocation13], 1
    %990 = vsyncpa [#allocation8], 1

// kernel: tpu_custom_call.1
$region0: #{tpu_custom_call.1}
  #allocation0 [shape = 'u32[]', space=smem, size = 0x4, offset = 0x4, fixed_abs, tag = 'smem constant byte address 0x4 - core index']
  #allocation1 [shape = 'u32[72,128]{1,0:T(1,128)}', space=vmem, size = 0x9000, scoped, tag = 'internal scratch']
  #allocation2 [shape = 'f32[1,128]{1,0:T(1,128)}', space=vmem, size = 0x200, scoped, tag = 'scratch operand']
  #allocation3 [shape = 's32[1,128]{1,0:T(1,128)}', space=vmem, size = 0x200, scoped, tag = 'scratch operand']
  #allocation4 [shape = 's32[1]{0}', space=sflag, size = 0x4, scoped, tag = 'scoped memory for tpu_custom_call.1']
  #allocation5 [shape = 'u8[512]{0}', space=smem, size = 0x200, scoped, tag = 'prefetched SMEM operand 0']
  %s0 = inlined_call_operand.hbm [shape: s32[2], index: 0, kind: input, shape index: {}]
  %s1 = inlined_call_operand.hbm [shape: bf16[128,128], index: 1, kind: input, shape index: {}]
  %s2 = inlined_call_operand.vmem [shape: s32[1,128], index: 2, kind: input, shape index: {}]
  %s3 = inlined_call_operand.hbm [shape: bf16[384,128], index: 3, kind: input, shape index: {}]
  %s4 = inlined_call_operand.hbm [shape: bf16[16,128], index: 4, kind: input, shape index: {}]
  %s5 = inlined_call_operand.hbm [shape: bf16[16,128], index: 5, kind: input, shape index: {}]
  %s6 = inlined_call_operand.hbm [shape: f32[1,128], index: 6, kind: output, shape index: {}]
  %s7 = sld [smem:[#allocation0]]
  $region54: #{tpu_custom_call.1} parent=0
    _
  %s9 = ssub.s32 1, %s7
  %s10 = scalar_select 0, %s9, %s7
  %s12 = sshll.u32 %s0, 4
  %s13 = int_to_ptr.hbm [resolvable:$true] %s12
  %15 = dma.hbm_to_smem %s13, 16, [#allocation5], [#allocation4]
  %17 = dma.done [#allocation4], 16
  %18 = sfence
  $region1: #{tpu_custom_call.1} parent=0
    #allocation6 [shape = 'u8[32768]{0}', space=vmem, size = 0x8000, scoped, tag = 'input window, operand 1, single buffered']
    #allocation7 [shape = 's32[1]{0}', space=sflag, size = 0x4, scoped, tag = 'scoped memory for tpu_custom_call.1']
    #allocation8 [shape = 's32[1]{0}', space=sflag, size = 0x4, scoped, tag = 'scoped memory for tpu_custom_call.1']
    #allocation9 [shape = 'u8[98304]{0}', space=vmem, size = 0x18000, scoped, tag = 'input window, operand 3, single buffered']
    #allocation10 [shape = 's32[1]{0}', space=sflag, size = 0x4, scoped, tag = 'scoped memory for tpu_custom_call.1']
    #allocation11 [shape = 'u8[4096]{0}', space=vmem, size = 0x1000, scoped, tag = 'input window, operand 4, single buffered']
    #allocation12 [shape = 'u8[4096]{0}', space=vmem, size = 0x1000, scoped, tag = 'input window, operand 5, single buffered']
    #allocation13 [shape = 's32[1]{0}', space=sflag, size = 0x4, scoped, tag = 'scoped memory for tpu_custom_call.1']
    #allocation14 [shape = 'u8[512]{0}', space=vmem, size = 0x400, scoped, tag = 'output window, operand 0, single buffered']
    %19 = vsyncpa [#allocation7], 0
    %20 = vsyncpa [#allocation10], 0
    %21 = vsyncpa [#allocation13], 0
    %22 = vsyncpa [#allocation8], 0
    // Predicated region
    $region2: #{tpu_custom_call.1} parent=1 // pred_check
      _
    $region3: #{tpu_custom_call.1} parent=1 // pred_check_branch
      %24 = sbr.rel (0) target = $region5
    $region4: #{tpu_custom_call.1} parent=1 // pred_region
      %26 = vsyncadd [#allocation7], 0
      %s27 = sshll.u32 %s1, 4
      %s28 = int_to_ptr.hbm [resolvable:$true] %s27
      %s29 = sshll.u32 [#allocation6], 4
      %s30 = int_to_ptr.vmem [resolvable:$true] %s29
      %35 = dma.hbm_to_vmem [thread:$0]  %s28, 1024, %s30, [#allocation7], 64, 64, 4
    $region5: #{tpu_custom_call.1} parent=1 // pred_fallthru
      _
    // Predicated region
    $region6: #{tpu_custom_call.1} parent=1 // pred_check
      _
    $region7: #{tpu_custom_call.1} parent=1 // pred_check_branch
      %37 = sbr.rel (0) target = $region9
    $region8: #{tpu_custom_call.1} parent=1 // pred_region
      _
    $region9: #{tpu_custom_call.1} parent=1 // pred_fallthru
      _
    // Predicated region
    $region10: #{tpu_custom_call.1} parent=1 // pred_check
      _
    $region11: #{tpu_custom_call.1} parent=1 // pred_check_branch
      %39 = sbr.rel (0) target = $region13
    $region12: #{tpu_custom_call.1} parent=1 // pred_region
      %41 = vsyncadd [#allocation10], 0
      %s42 = sshll.u32 %s3, 4
      %s43 = int_to_ptr.hbm [resolvable:$true] %s42
      %s44 = sshll.u32 [#allocation9], 4
      %s45 = int_to_ptr.vmem [resolvable:$true] %s44
      %50 = dma.hbm_to_vmem [thread:$0]  %s43, 3072, %s45, [#allocation10], 64, 64, 4
    $region13: #{tpu_custom_call.1} parent=1 // pred_fallthru
      _
    // Predicated region
    $region14: #{tpu_custom_call.1} parent=1 // pred_check
      _
    $region15: #{tpu_custom_call.1} parent=1 // pred_check_branch
      %52 = sbr.rel (0) target = $region17
    $region16: #{tpu_custom_call.1} parent=1 // pred_region
      %54 = vsyncadd [#allocation10], 0
      %s55 = sshll.u32 %s4, 4
      %s56 = int_to_ptr.hbm [resolvable:$true] %s55
      %s57 = sshll.u32 [#allocation11], 4
      %s58 = int_to_ptr.vmem [resolvable:$true] %s57
      %63 = dma.hbm_to_vmem [thread:$0]  %s56, 128, %s58, [#allocation10], 64, 64, 4
    $region17: #{tpu_custom_call.1} parent=1 // pred_fallthru
      _
    // Predicated region
    $region18: #{tpu_custom_call.1} parent=1 // pred_check
      _
    $region19: #{tpu_custom_call.1} parent=1 // pred_check_branch
      %65 = sbr.rel (0) target = $region21
    $region20: #{tpu_custom_call.1} parent=1 // pred_region
      %67 = vsyncadd [#allocation13], 0
      %s68 = sshll.u32 %s5, 4
      %s69 = int_to_ptr.hbm [resolvable:$true] %s68
      %s70 = sshll.u32 [#allocation12], 4
      %s71 = int_to_ptr.vmem [resolvable:$true] %s70
      %76 = dma.hbm_to_vmem [thread:$0]  %s69, 128, %s71, [#allocation13], 64, 64, 4
    $region21: #{tpu_custom_call.1} parent=1 // pred_fallthru
      _
    // Predicated region
    $region22: #{tpu_custom_call.1} parent=1 // pred_check
      _
    $region23: #{tpu_custom_call.1} parent=1 // pred_check_branch
      %78 = sbr.rel (0) target = $region25
    $region24: #{tpu_custom_call.1} parent=1 // pred_region
      %80 = dma.done [#allocation7], 1024
    $region25: #{tpu_custom_call.1} parent=1 // pred_fallthru
      _
    // Predicated region
    $region26: #{tpu_custom_call.1} parent=1 // pred_check
      _
    $region27: #{tpu_custom_call.1} parent=1 // pred_check_branch
      %82 = sbr.rel (0) target = $region29
    $region28: #{tpu_custom_call.1} parent=1 // pred_region
      %84 = dma.done [#allocation10], 3072
    $region29: #{tpu_custom_call.1} parent=1 // pred_fallthru
      _
    // Predicated region
    $region30: #{tpu_custom_call.1} parent=1 // pred_check
      _
    $region31: #{tpu_custom_call.1} parent=1 // pred_check_branch
      %86 = sbr.rel (0) target = $region33
    $region32: #{tpu_custom_call.1} parent=1 // pred_region
      %88 = dma.done [#allocation10], 128
    $region33: #{tpu_custom_call.1} parent=1 // pred_fallthru
      _
    // Predicated region
    $region34: #{tpu_custom_call.1} parent=1 // pred_check
      _
    $region35: #{tpu_custom_call.1} parent=1 // pred_check_branch
      %90 = sbr.rel (0) target = $region37
    $region36: #{tpu_custom_call.1} parent=1 // pred_region
      %92 = dma.done [#allocation13], 128
    $region37: #{tpu_custom_call.1} parent=1 // pred_fallthru
      _
    %v93 = vld [vmem:[#allocation6] sm:$0xf]
    %v94 = vld [vmem:[#allocation6 + $0x4] sm:$0xf]
    %v95 = vld [vmem:[#allocation6 + $0x8] sm:$0xf]
    %v96 = vld [vmem:[#allocation6 + $0xc] sm:$0xf]
    %v97 = vld [vmem:[#allocation6 + $0x10] sm:$0xf]
    %v98 = vld [vmem:[#allocation6 + $0x14] sm:$0xf]
    %v99 = vld [vmem:[#allocation6 + $0x18] sm:$0xf]
    %v100 = vld [vmem:[#allocation6 + $0x1c] sm:$0xf]
    %v101 = vld [vmem:[#allocation6 + $0x20] sm:$0xf]
    %v102 = vld [vmem:[#allocation6 + $0x24] sm:$0xf]
    %v103 = vld [vmem:[#allocation6 + $0x28] sm:$0xf]
    %v104 = vld [vmem:[#allocation6 + $0x2c] sm:$0xf]
    %v105 = vld [vmem:[#allocation6 + $0x30] sm:$0xf]
    %v106 = vld [vmem:[#allocation6 + $0x34] sm:$0xf]
    %v107 = vld [vmem:[#allocation6 + $0x38] sm:$0xf]
    %v108 = vld [vmem:[#allocation6 + $0x3c] sm:$0xf]
    %v109 = vld [vmem:[%s2] sm:$0x1]
    %v110 = vld [vmem:[#allocation9] sm:$0xf]
    %v111 = vld [vmem:[#allocation9 + $0x4] sm:$0xf]
    %v112 = vld [vmem:[#allocation9 + $0x8] sm:$0xf]
    %v113 = vld [vmem:[#allocation9 + $0xc] sm:$0xf]
    %v114 = vld [vmem:[#allocation9 + $0x10] sm:$0xf]
    %v115 = vld [vmem:[#allocation9 + $0x14] sm:$0xf]
    %v116 = vld [vmem:[#allocation9 + $0x18] sm:$0xf]
    %v117 = vld [vmem:[#allocation9 + $0x1c] sm:$0xf]
    %v118 = vld [vmem:[#allocation9 + $0x20] sm:$0xf]
    %v119 = vld [vmem:[#allocation9 + $0x24] sm:$0xf]
    %v120 = vld [vmem:[#allocation9 + $0x28] sm:$0xf]
    %v121 = vld [vmem:[#allocation9 + $0x2c] sm:$0xf]
    %v122 = vld [vmem:[#allocation9 + $0x30] sm:$0xf]
    %v123 = vld [vmem:[#allocation9 + $0x34] sm:$0xf]
    %v124 = vld [vmem:[#allocation9 + $0x38] sm:$0xf]
    %v125 = vld [vmem:[#allocation9 + $0x3c] sm:$0xf]
    %v126 = vld [vmem:[#allocation9 + $0x40] sm:$0xf]
    %v127 = vld [vmem:[#allocation9 + $0x44] sm:$0xf]
    %v128 = vld [vmem:[#allocation9 + $0x48] sm:$0xf]
    %v129 = vld [vmem:[#allocation9 + $0x4c] sm:$0xf]
    %v130 = vld [vmem:[#allocation9 + $0x50] sm:$0xf]
    %v131 = vld [vmem:[#allocation9 + $0x54] sm:$0xf]
    %v132 = vld [vmem:[#allocation9 + $0x58] sm:$0xf]
    %v133 = vld [vmem:[#allocation9 + $0x5c] sm:$0xf]
    %v134 = vld [vmem:[#allocation9 + $0x60] sm:$0xf]
    %v135 = vld [vmem:[#allocation9 + $0x64] sm:$0xf]
    %v136 = vld [vmem:[#allocation9 + $0x68] sm:$0xf]
    %v137 = vld [vmem:[#allocation9 + $0x6c] sm:$0xf]
    %v138 = vld [vmem:[#allocation9 + $0x70] sm:$0xf]
    %v139 = vld [vmem:[#allocation9 + $0x74] sm:$0xf]
    %v140 = vld [vmem:[#allocation9 + $0x78] sm:$0xf]
    %v141 = vld [vmem:[#allocation9 + $0x7c] sm:$0xf]
    %v142 = vld [vmem:[#allocation9 + $0x80] sm:$0xf]
    %v143 = vld [vmem:[#allocation9 + $0x84] sm:$0xf]
    %v144 = vld [vmem:[#allocation9 + $0x88] sm:$0xf]
    %v145 = vld [vmem:[#allocation9 + $0x8c] sm:$0xf]
    %v146 = vld [vmem:[#allocation9 + $0x90] sm:$0xf]
    %v147 = vld [vmem:[#allocation9 + $0x94] sm:$0xf]
    %v148 = vld [vmem:[#allocation9 + $0x98] sm:$0xf]
    %v149 = vld [vmem:[#allocation9 + $0x9c] sm:$0xf]
    %v150 = vld [vmem:[#allocation9 + $0xa0] sm:$0xf]
    %v151 = vld [vmem:[#allocation9 + $0xa4] sm:$0xf]
    %v152 = vld [vmem:[#allocation9 + $0xa8] sm:$0xf]
    %v153 = vld [vmem:[#allocation9 + $0xac] sm:$0xf]
    %v154 = vld [vmem:[#allocation9 + $0xb0] sm:$0xf]
    %v155 = vld [vmem:[#allocation9 + $0xb4] sm:$0xf]
    %v156 = vld [vmem:[#allocation9 + $0xb8] sm:$0xf]
    %v157 = vld [vmem:[#allocation9 + $0xbc] sm:$0xf]
    %v206 = vunpack.c.l.b16 %v110
    %v207 = vunpack.c.l.b16 %v111
    %v208 = vunpack.c.l.b16 %v112
    %v209 = vunpack.c.l.b16 %v113
    %v210 = vunpack.c.l.b16 %v114
    %v211 = vunpack.c.l.b16 %v115
    %v212 = vunpack.c.l.b16 %v116
    %v213 = vunpack.c.l.b16 %v117
    %v214 = vunpack.c.l.b16 %v118
    %v215 = vunpack.c.l.b16 %v119
    %v216 = vunpack.c.l.b16 %v120
    %v217 = vunpack.c.l.b16 %v121
    %v218 = vunpack.c.l.b16 %v122
    %v219 = vunpack.c.l.b16 %v123
    %v220 = vunpack.c.l.b16 %v124
    %v221 = vunpack.c.l.b16 %v125
    %v222 = vunpack.c.l.b16 %v126
    %v223 = vunpack.c.l.b16 %v127
    %v224 = vunpack.c.l.b16 %v128
    %v225 = vunpack.c.l.b16 %v129
    %v226 = vunpack.c.l.b16 %v130
    %v227 = vunpack.c.l.b16 %v131
    %v228 = vunpack.c.l.b16 %v132
    %v229 = vunpack.c.l.b16 %v133
    %v230 = vunpack.c.l.b16 %v134
    %v231 = vunpack.c.l.b16 %v135
    %v232 = vunpack.c.l.b16 %v136
    %v233 = vunpack.c.l.b16 %v137
    %v234 = vunpack.c.l.b16 %v138
    %v235 = vunpack.c.l.b16 %v139
    %v236 = vunpack.c.l.b16 %v140
    %v237 = vunpack.c.l.b16 %v141
    %v238 = vunpack.c.l.b16 %v142
    %v239 = vunpack.c.l.b16 %v143
    %v240 = vunpack.c.l.b16 %v144
    %v241 = vunpack.c.l.b16 %v145
    %v242 = vunpack.c.l.b16 %v146
    %v243 = vunpack.c.l.b16 %v147
    %v244 = vunpack.c.l.b16 %v148
    %v245 = vunpack.c.l.b16 %v149
    %v246 = vunpack.c.l.b16 %v150
    %v247 = vunpack.c.l.b16 %v151
    %v248 = vunpack.c.l.b16 %v152
    %v249 = vunpack.c.l.b16 %v153
    %v250 = vunpack.c.l.b16 %v154
    %v251 = vunpack.c.l.b16 %v155
    %v252 = vunpack.c.l.b16 %v156
    %v253 = vunpack.c.l.b16 %v157
    %v254 = vpack.c.b16 %v207, %v206
    %v255 = vpack.c.b16 %v209, %v208
    %v256 = vpack.c.b16 %v211, %v210
    %v257 = vpack.c.b16 %v213, %v212
    %v258 = vpack.c.b16 %v215, %v214
    %v259 = vpack.c.b16 %v217, %v216
    %v260 = vpack.c.b16 %v219, %v218
    %v261 = vpack.c.b16 %v221, %v220
    %v262 = vpack.c.b16 %v223, %v222
    %v263 = vpack.c.b16 %v225, %v224
    %v264 = vpack.c.b16 %v227, %v226
    %v265 = vpack.c.b16 %v229, %v228
    %v266 = vpack.c.b16 %v231, %v230
    %v267 = vpack.c.b16 %v233, %v232
    %v268 = vpack.c.b16 %v235, %v234
    %v269 = vpack.c.b16 %v237, %v236
    %v270 = vpack.c.b16 %v239, %v238
    %v271 = vpack.c.b16 %v241, %v240
    %v272 = vpack.c.b16 %v243, %v242
    %v273 = vpack.c.b16 %v245, %v244
    %v274 = vpack.c.b16 %v247, %v246
    %v275 = vpack.c.b16 %v249, %v248
    %v276 = vpack.c.b16 %v251, %v250
    %v277 = vpack.c.b16 %v253, %v252
    %v318 = vunpack.c.l.b16 %v93
    %v319 = vunpack.c.l.b16 %v94
    %v320 = vunpack.c.l.b16 %v95
    %v321 = vunpack.c.l.b16 %v96
    %v322 = vunpack.c.l.b16 %v97
    %v323 = vunpack.c.l.b16 %v98
    %v324 = vunpack.c.l.b16 %v99
    %v325 = vunpack.c.l.b16 %v100
    %v326 = vunpack.c.l.b16 %v101
    %v327 = vunpack.c.l.b16 %v102
    %v328 = vunpack.c.l.b16 %v103
    %v329 = vunpack.c.l.b16 %v104
    %v330 = vunpack.c.l.b16 %v105
    %v331 = vunpack.c.l.b16 %v106
    %v332 = vunpack.c.l.b16 %v107
    %v333 = vunpack.c.l.b16 %v108
    %v334 = vpack.c.b16 %v319, %v318
    %v335 = vpack.c.b16 %v321, %v320
    %v336 = vpack.c.b16 %v323, %v322
    %v337 = vpack.c.b16 %v325, %v324
    %v338 = vpack.c.b16 %v327, %v326
    %v339 = vpack.c.b16 %v329, %v328
    %v340 = vpack.c.b16 %v331, %v330
    %v341 = vpack.c.b16 %v333, %v332
    %350 = vmatpush.bf16.msra.mxu0 %v341
    %351 = vmatpush.bf16.msra.mxu0 %v340
    %352 = vmatpush.bf16.msra.mxu0 %v339
    %353 = vmatpush.bf16.msra.mxu0 %v338
    %354 = vmatpush.bf16.msra.mxu0 %v337
    %355 = vmatpush.bf16.msra.mxu0 %v336
    %356 = vmatpush.bf16.msra.mxu0 %v335
    %357 = vmatpush.bf16.msra.mxu0 %v334
    %358 = vmatmul.bf16.gmra.mxu0 %v254
    %v359 = vpop.f32.mrf.mxu0
    %v360 = vadd.f32 0.0, %v359
    %v361 = vpop.f32.mrf.mxu0
    %v362 = vadd.f32 0.0, %v361
    %363 = vmatmul.bf16.gmra.mxu0 %v255
    %v364 = vpop.f32.mrf.mxu0
    %v365 = vadd.f32 0.0, %v364
    %v366 = vpop.f32.mrf.mxu0
    %v367 = vadd.f32 0.0, %v366
    %368 = vmatmul.bf16.gmra.mxu0 %v256
    %v369 = vpop.f32.mrf.mxu0
    %v370 = vadd.f32 0.0, %v369
    %v371 = vpop.f32.mrf.mxu0
    %v372 = vadd.f32 0.0, %v371
    %373 = vmatmul.bf16.gmra.mxu0 %v257
    %v374 = vpop.f32.mrf.mxu0
    %v375 = vadd.f32 0.0, %v374
    %v376 = vpop.f32.mrf.mxu0
    %v377 = vadd.f32 0.0, %v376
    %378 = vmatmul.bf16.gmra.mxu0 %v258
    %v379 = vpop.f32.mrf.mxu0
    %v380 = vadd.f32 0.0, %v379
    %v381 = vpop.f32.mrf.mxu0
    %v382 = vadd.f32 0.0, %v381
    %383 = vmatmul.bf16.gmra.mxu0 %v259
    %v384 = vpop.f32.mrf.mxu0
    %v385 = vadd.f32 0.0, %v384
    %v386 = vpop.f32.mrf.mxu0
    %v387 = vadd.f32 0.0, %v386
    %388 = vmatmul.bf16.gmra.mxu0 %v260
    %v389 = vpop.f32.mrf.mxu0
    %v390 = vadd.f32 0.0, %v389
    %v391 = vpop.f32.mrf.mxu0
    %v392 = vadd.f32 0.0, %v391
    %393 = vmatmul.bf16.gmra.mxu0 %v261
    %v394 = vpop.f32.mrf.mxu0
    %v395 = vadd.f32 0.0, %v394
    %v396 = vpop.f32.mrf.mxu0
    %v397 = vadd.f32 0.0, %v396
    %398 = vmatmul.bf16.gmra.mxu0 %v262
    %v399 = vpop.f32.mrf.mxu0
    %v400 = vadd.f32 0.0, %v399
    %v401 = vpop.f32.mrf.mxu0
    %v402 = vadd.f32 0.0, %v401
    %403 = vmatmul.bf16.gmra.mxu0 %v263
    %v404 = vpop.f32.mrf.mxu0
    %v405 = vadd.f32 0.0, %v404
    %v406 = vpop.f32.mrf.mxu0
    %v407 = vadd.f32 0.0, %v406
    %408 = vmatmul.bf16.gmra.mxu0 %v264
    %v409 = vpop.f32.mrf.mxu0
    %v410 = vadd.f32 0.0, %v409
    %v411 = vpop.f32.mrf.mxu0
    %v412 = vadd.f32 0.0, %v411
    %413 = vmatmul.bf16.gmra.mxu0 %v265
    %v414 = vpop.f32.mrf.mxu0
    %v415 = vadd.f32 0.0, %v414
    %v416 = vpop.f32.mrf.mxu0
    %v417 = vadd.f32 0.0, %v416
    %418 = vmatmul.bf16.gmra.mxu0 %v266
    %v419 = vpop.f32.mrf.mxu0
    %v420 = vadd.f32 0.0, %v419
    %v421 = vpop.f32.mrf.mxu0
    %v422 = vadd.f32 0.0, %v421
    %423 = vmatmul.bf16.gmra.mxu0 %v267
    %v424 = vpop.f32.mrf.mxu0
    %v425 = vadd.f32 0.0, %v424
    %v426 = vpop.f32.mrf.mxu0
    %v427 = vadd.f32 0.0, %v426
    %428 = vmatmul.bf16.gmra.mxu0 %v268
    %v429 = vpop.f32.mrf.mxu0
    %v430 = vadd.f32 0.0, %v429
    %v431 = vpop.f32.mrf.mxu0
    %v432 = vadd.f32 0.0, %v431
    %433 = vmatmul.bf16.gmra.mxu0 %v269
    %v434 = vpop.f32.mrf.mxu0
    %v435 = vadd.f32 0.0, %v434
    %v436 = vpop.f32.mrf.mxu0
    %v437 = vadd.f32 0.0, %v436
    %438 = vmatmul.bf16.gmra.mxu0 %v270
    %v439 = vpop.f32.mrf.mxu0
    %v440 = vadd.f32 0.0, %v439
    %v441 = vpop.f32.mrf.mxu0
    %v442 = vadd.f32 0.0, %v441
    %443 = vmatmul.bf16.gmra.mxu0 %v271
    %v444 = vpop.f32.mrf.mxu0
    %v445 = vadd.f32 0.0, %v444
    %v446 = vpop.f32.mrf.mxu0
    %v447 = vadd.f32 0.0, %v446
    %448 = vmatmul.bf16.gmra.mxu0 %v272
    %v449 = vpop.f32.mrf.mxu0
    %v450 = vadd.f32 0.0, %v449
    %v451 = vpop.f32.mrf.mxu0
    %v452 = vadd.f32 0.0, %v451
    %453 = vmatmul.bf16.gmra.mxu0 %v273
    %v454 = vpop.f32.mrf.mxu0
    %v455 = vadd.f32 0.0, %v454
    %v456 = vpop.f32.mrf.mxu0
    %v457 = vadd.f32 0.0, %v456
    %458 = vmatmul.bf16.gmra.mxu0 %v274
    %v459 = vpop.f32.mrf.mxu0
    %v460 = vadd.f32 0.0, %v459
    %v461 = vpop.f32.mrf.mxu0
    %v462 = vadd.f32 0.0, %v461
    %463 = vmatmul.bf16.gmra.mxu0 %v275
    %v464 = vpop.f32.mrf.mxu0
    %v465 = vadd.f32 0.0, %v464
    %v466 = vpop.f32.mrf.mxu0
    %v467 = vadd.f32 0.0, %v466
    %468 = vmatmul.bf16.gmra.mxu0 %v276
    %v469 = vpop.f32.mrf.mxu0
    %v470 = vadd.f32 0.0, %v469
    %v471 = vpop.f32.mrf.mxu0
    %v472 = vadd.f32 0.0, %v471
    %473 = vmatmul.bf16.gmra.mxu0 %v277
    %v474 = vpop.f32.mrf.mxu0
    %v475 = vadd.f32 0.0, %v474
    %v476 = vpop.f32.mrf.mxu0
    %v477 = vadd.f32 0.0, %v476
    %478 = vdwg.mxu0
    %v479 = vpack.c.bf16 %v400, %v400
    %v480 = vpack.c.bf16 %v402, %v402
    %v481 = vpack.c.bf16 %v405, %v405
    %v482 = vpack.c.bf16 %v407, %v407
    %v483 = vpack.c.bf16 %v410, %v410
    %v484 = vpack.c.bf16 %v412, %v412
    %v485 = vpack.c.bf16 %v415, %v415
    %v486 = vpack.c.bf16 %v417, %v417
    %v487 = vpack.c.bf16 %v420, %v420
    %v488 = vpack.c.bf16 %v422, %v422
    %v489 = vpack.c.bf16 %v425, %v425
    %v490 = vpack.c.bf16 %v427, %v427
    %v491 = vpack.c.bf16 %v430, %v430
    %v492 = vpack.c.bf16 %v432, %v432
    %v493 = vpack.c.bf16 %v435, %v435
    %v494 = vpack.c.bf16 %v437, %v437
    %v495 = vpack.c.bf16 %v440, %v440
    %v496 = vpack.c.bf16 %v442, %v442
    %v497 = vpack.c.bf16 %v445, %v445
    %v498 = vpack.c.bf16 %v447, %v447
    %v499 = vpack.c.bf16 %v450, %v450
    %v500 = vpack.c.bf16 %v452, %v452
    %v501 = vpack.c.bf16 %v455, %v455
    %v502 = vpack.c.bf16 %v457, %v457
    %v503 = vpack.c.bf16 %v460, %v460
    %v504 = vpack.c.bf16 %v462, %v462
    %v505 = vpack.c.bf16 %v465, %v465
    %v506 = vpack.c.bf16 %v467, %v467
    %v507 = vpack.c.bf16 %v470, %v470
    %v508 = vpack.c.bf16 %v472, %v472
    %v509 = vpack.c.bf16 %v475, %v475
    %v510 = vpack.c.bf16 %v477, %v477
    %511 = vst [vmem:[#allocation2] sm:$0x1] 0.0
    %512 = vst [vmem:[#allocation3] sm:$0x1] %v109
    %s513 = smul.u32 0, 2
    %s514 = sld [smem:[#allocation5 + %s513]]
    %p515 = scmp.gt.s32.totalorder %s514, 0
    // Predicated region
    $region38: #{tpu_custom_call.1} parent=1 // pred_check
      %p516 = pneg %p515
    $region39: #{tpu_custom_call.1} parent=1 // pred_check_branch
      %518 = sbr.rel (%p516) target = $region41
    $region40: #{tpu_custom_call.1} parent=1 // pred_region
      %vm519 = vcmp.ge.s32.totalorder %v109, 16
      %vm520 = vcmp.lt.s32.totalorder %v109, 32
      %vm521 = vmand %vm519, %vm520
      %v522 = vsub.s32 %v109, 16
      %vm523 = vcmp.gt.s32.totalorder %v522, 0
      %v524 = vsel %vm523, %v522, 0
      %vm525 = vcmp.lt.s32.totalorder %v524, 15
      %v526 = vsel %vm525, %v524, 15
      %v527 = vld [vmem:[#allocation11] sm:$0xf]
      %v528 = vld [vmem:[#allocation11 + $0x4] sm:$0xf]
      %v531 = vunpack.c.l.b16 %v527
      %v532 = vunpack.c.l.b16 %v528
      %v533 = vpack.c.b16 %v532, %v531
      %v551 = vunpack.c.l.b16 %v479
      %v552 = vunpack.c.l.b16 %v480
      %v553 = vunpack.c.l.b16 %v481
      %v554 = vunpack.c.l.b16 %v482
      %v555 = vunpack.c.l.b16 %v483
      %v556 = vunpack.c.l.b16 %v484
      %v557 = vunpack.c.l.b16 %v485
      %v558 = vunpack.c.l.b16 %v486
      %v559 = vunpack.c.l.b16 %v487
      %v560 = vunpack.c.l.b16 %v488
      %v561 = vunpack.c.l.b16 %v489
      %v562 = vunpack.c.l.b16 %v490
      %v563 = vunpack.c.l.b16 %v491
      %v564 = vunpack.c.l.b16 %v492
      %v565 = vunpack.c.l.b16 %v493
      %v566 = vunpack.c.l.b16 %v494
      %v567 = vpack.c.b16 %v552, %v551
      %v568 = vpack.c.b16 %v554, %v553
      %v569 = vpack.c.b16 %v556, %v555
      %v570 = vpack.c.b16 %v558, %v557
      %v571 = vpack.c.b16 %v560, %v559
      %v572 = vpack.c.b16 %v562, %v561
      %v573 = vpack.c.b16 %v564, %v563
      %v574 = vpack.c.b16 %v566, %v565
      %583 = vmatpush.bf16.msra.mxu0 %v574
      %584 = vmatpush.bf16.msra.mxu0 %v573
      %585 = vmatpush.bf16.msra.mxu0 %v572
      %586 = vmatpush.bf16.msra.mxu0 %v571
      %587 = vmatpush.bf16.msra.mxu0 %v570
      %588 = vmatpush.bf16.msra.mxu0 %v569
      %589 = vmatpush.bf16.msra.mxu0 %v568
      %590 = vmatpush.bf16.msra.mxu0 %v567
      %591 = vmatmul.bf16.gmra.mxu0 %v533
      %v592 = vpop.f32.mrf.mxu0
      %v593 = vadd.f32 0.0, %v592
      %v594 = vpop.f32.mrf.mxu0
      %v595 = vadd.f32 0.0, %v594
      %596 = vdwg.mxu0
      %v597 = vlaneseq
      %v598 = vshrl.u32 %v597, 7
      %v599 = vadd.s32 %v598, 8
      %v600 = vmax.f32 %v593, %v595
      %v601 = vrot.slane %v600, 4
      %v602 = vmax.f32 %v600, %v601
      %v603 = vrot.slane %v602, 2
      %v604 = vmax.f32 %v602, %v603
      %v605 = vrot.slane %v604, 1
      %v606 = vmax.f32 %v604, %v605
      %v607 = vsub.f32 %v593, %v606
      %v608 = vsub.f32 %v595, %v606
      %v609 = vmul.f32 %v607, 1.442695
      %v610 = vpow.pop %v609
      %v611 = vmul.f32 %v608, 1.442695
      %v612 = vpow.pop %v611
      %v613 = vadd.f32 %v610, %v612
      %v614 = vrot.slane %v613, 4
      %v615 = vadd.f32 %v613, %v614
      %v616 = vrot.slane %v615, 2
      %v617 = vadd.f32 %v615, %v616
      %v618 = vrot.slane %v617, 1
      %v619 = vadd.f32 %v617, %v618
      %v620 = vperm.slane %v526, 0
      %vm621 = vcmp.eq.s32.totalorder %v598, %v620
      %vm622 = vcmp.eq.s32.totalorder %v599, %v620
      %v623 = vsel %vm621, %v593, 0.0
      %v624 = vsel %vm622, %v595, 0.0
      %v625 = vadd.f32 %v623, %v624
      %v626 = vrot.slane %v625, 4
      %v627 = vadd.f32 %v625, %v626
      %v628 = vrot.slane %v627, 2
      %v629 = vadd.f32 %v627, %v628
      %v630 = vrot.slane %v629, 1
      %v631 = vadd.f32 %v629, %v630
      %v632 = vsub.f32 %v631, %v606
      %v633 = vlog2.pop %v619
      %v634 = vmul.f32 %v633, 0.6931472
      %v635 = vsub.f32 %v632, %v634
      %v636 = vld [vmem:[#allocation2] sm:$0x1]
      %v637 = vsel %vm521, %v635, %v636
      %638 = vst [vmem:[#allocation2] sm:$0x1] %v637
      %v639 = vld [vmem:[#allocation3] sm:$0x1]
      %v640 = vsel %vm521, 16, %v639
      %641 = vst [vmem:[#allocation3] sm:$0x1] %v640
    $region41: #{tpu_custom_call.1} parent=1 // pred_fallthru
      _
    %s642 = sadd.s32 %s513, 1
    %s643 = sld [smem:[#allocation5 + %s642]]
    %p644 = scmp.gt.s32.totalorder %s643, 0
    // Predicated region
    $region42: #{tpu_custom_call.1} parent=1 // pred_check
      %p645 = pneg %p644
    $region43: #{tpu_custom_call.1} parent=1 // pred_check_branch
      %647 = sbr.rel (%p645) target = $region45
    $region44: #{tpu_custom_call.1} parent=1 // pred_region
      %vm648 = vcmp.ge.s32.totalorder %v109, 32
      %vm649 = vcmp.lt.s32.totalorder %v109, 48
      %vm650 = vmand %vm648, %vm649
      %v651 = vsub.s32 %v109, 32
      %vm652 = vcmp.gt.s32.totalorder %v651, 0
      %v653 = vsel %vm652, %v651, 0
      %vm654 = vcmp.lt.s32.totalorder %v653, 15
      %v655 = vsel %vm654, %v653, 15
      %v656 = vld [vmem:[#allocation12] sm:$0xf]
      %v657 = vld [vmem:[#allocation12 + $0x4] sm:$0xf]
      %v660 = vunpack.c.l.b16 %v656
      %v661 = vunpack.c.l.b16 %v657
      %v662 = vpack.c.b16 %v661, %v660
      %v680 = vunpack.c.l.b16 %v495
      %v681 = vunpack.c.l.b16 %v496
      %v682 = vunpack.c.l.b16 %v497
      %v683 = vunpack.c.l.b16 %v498
      %v684 = vunpack.c.l.b16 %v499
      %v685 = vunpack.c.l.b16 %v500
      %v686 = vunpack.c.l.b16 %v501
      %v687 = vunpack.c.l.b16 %v502
      %v688 = vunpack.c.l.b16 %v503
      %v689 = vunpack.c.l.b16 %v504
      %v690 = vunpack.c.l.b16 %v505
      %v691 = vunpack.c.l.b16 %v506
      %v692 = vunpack.c.l.b16 %v507
      %v693 = vunpack.c.l.b16 %v508
      %v694 = vunpack.c.l.b16 %v509
      %v695 = vunpack.c.l.b16 %v510
      %v696 = vpack.c.b16 %v681, %v680
      %v697 = vpack.c.b16 %v683, %v682
      %v698 = vpack.c.b16 %v685, %v684
      %v699 = vpack.c.b16 %v687, %v686
      %v700 = vpack.c.b16 %v689, %v688
      %v701 = vpack.c.b16 %v691, %v690
      %v702 = vpack.c.b16 %v693, %v692
      %v703 = vpack.c.b16 %v695, %v694
      %712 = vmatpush.bf16.msra.mxu0 %v703
      %713 = vmatpush.bf16.msra.mxu0 %v702
      %714 = vmatpush.bf16.msra.mxu0 %v701
      %715 = vmatpush.bf16.msra.mxu0 %v700
      %716 = vmatpush.bf16.msra.mxu0 %v699
      %717 = vmatpush.bf16.msra.mxu0 %v698
      %718 = vmatpush.bf16.msra.mxu0 %v697
      %719 = vmatpush.bf16.msra.mxu0 %v696
      %720 = vmatmul.bf16.gmra.mxu0 %v662
      %v721 = vpop.f32.mrf.mxu0
      %v722 = vadd.f32 0.0, %v721
      %v723 = vpop.f32.mrf.mxu0
      %v724 = vadd.f32 0.0, %v723
      %725 = vdwg.mxu0
      %v726 = vlaneseq
      %v727 = vshrl.u32 %v726, 7
      %v728 = vadd.s32 %v727, 8
      %v729 = vmax.f32 %v722, %v724
      %v730 = vrot.slane %v729, 4
      %v731 = vmax.f32 %v729, %v730
      %v732 = vrot.slane %v731, 2
      %v733 = vmax.f32 %v731, %v732
      %v734 = vrot.slane %v733, 1
      %v735 = vmax.f32 %v733, %v734
      %v736 = vsub.f32 %v722, %v735
      %v737 = vsub.f32 %v724, %v735
      %v738 = vmul.f32 %v736, 1.442695
      %v739 = vpow.pop %v738
      %v740 = vmul.f32 %v737, 1.442695
      %v741 = vpow.pop %v740
      %v742 = vadd.f32 %v739, %v741
      %v743 = vrot.slane %v742, 4
      %v744 = vadd.f32 %v742, %v743
      %v745 = vrot.slane %v744, 2
      %v746 = vadd.f32 %v744, %v745
      %v747 = vrot.slane %v746, 1
      %v748 = vadd.f32 %v746, %v747
      %v749 = vperm.slane %v655, 0
      %vm750 = vcmp.eq.s32.totalorder %v727, %v749
      %vm751 = vcmp.eq.s32.totalorder %v728, %v749
      %v752 = vsel %vm750, %v722, 0.0
      %v753 = vsel %vm751, %v724, 0.0
      %v754 = vadd.f32 %v752, %v753
      %v755 = vrot.slane %v754, 4
      %v756 = vadd.f32 %v754, %v755
      %v757 = vrot.slane %v756, 2
      %v758 = vadd.f32 %v756, %v757
      %v759 = vrot.slane %v758, 1
      %v760 = vadd.f32 %v758, %v759
      %v761 = vsub.f32 %v760, %v735
      %v762 = vlog2.pop %v748
      %v763 = vmul.f32 %v762, 0.6931472
      %v764 = vsub.f32 %v761, %v763
      %v765 = vld [vmem:[#allocation2] sm:$0x1]
      %v766 = vsel %vm650, %v764, %v765
      %767 = vst [vmem:[#allocation2] sm:$0x1] %v766
      %v768 = vld [vmem:[#allocation3] sm:$0x1]
      %v769 = vsel %vm650, 17, %v768
      %770 = vst [vmem:[#allocation3] sm:$0x1] %v769
    $region45: #{tpu_custom_call.1} parent=1 // pred_fallthru
      _
    %v771 = vld [vmem:[#allocation3] sm:$0x1]
    %v772 = vlaneseq
    %v773 = vshrl.u32 %v772, 7
    %v774 = vadd.s32 %v773, 8
    %v775 = vadd.s32 %v773, 16
    %v776 = vadd.s32 %v773, 24
    %v777 = vadd.s32 %v773, 32
    %v778 = vadd.s32 %v773, 40
    %v779 = vadd.s32 %v773, 48
    %v780 = vadd.s32 %v773, 56
    %v781 = vadd.s32 %v773, 64
    %v782 = vadd.s32 %v773, 72
    %v783 = vadd.s32 %v773, 80
    %v784 = vadd.s32 %v773, 88
    %v785 = vadd.s32 %v773, 96
    %v786 = vadd.s32 %v773, 104
    %v787 = vadd.s32 %v773, 112
    %v788 = vadd.s32 %v773, 120
    %vm789 = vcmp.lt.s32.totalorder %v773, 18
    %vm790 = vcmp.lt.s32.totalorder %v774, 18
    %vm791 = vcmp.lt.s32.totalorder %v775, 18
    %vm792 = vcmp.lt.s32.totalorder %v776, 18
    %vm793 = vcmp.lt.s32.totalorder %v777, 18
    %vm794 = vcmp.lt.s32.totalorder %v778, 18
    %vm795 = vcmp.lt.s32.totalorder %v779, 18
    %vm796 = vcmp.lt.s32.totalorder %v780, 18
    %vm797 = vcmp.lt.s32.totalorder %v781, 18
    %vm798 = vcmp.lt.s32.totalorder %v782, 18
    %vm799 = vcmp.lt.s32.totalorder %v783, 18
    %vm800 = vcmp.lt.s32.totalorder %v784, 18
    %vm801 = vcmp.lt.s32.totalorder %v785, 18
    %vm802 = vcmp.lt.s32.totalorder %v786, 18
    %vm803 = vcmp.lt.s32.totalorder %v787, 18
    %vm804 = vcmp.lt.s32.totalorder %v788, 18
    %v805 = vsel %vm789, %v360, -1e+30
    %v806 = vsel %vm790, %v362, -1e+30
    %v807 = vsel %vm791, %v365, -1e+30
    %v808 = vsel %vm792, %v367, -1e+30
    %v809 = vsel %vm793, %v370, -1e+30
    %v810 = vsel %vm794, %v372, -1e+30
    %v811 = vsel %vm795, %v375, -1e+30
    %v812 = vsel %vm796, %v377, -1e+30
    %v813 = vsel %vm797, %v380, -1e+30
    %v814 = vsel %vm798, %v382, -1e+30
    %v815 = vsel %vm799, %v385, -1e+30
    %v816 = vsel %vm800, %v387, -1e+30
    %v817 = vsel %vm801, %v390, -1e+30
    %v818 = vsel %vm802, %v392, -1e+30
    %v819 = vsel %vm803, %v395, -1e+30
    %v820 = vsel %vm804, %v397, -1e+30
    %v821 = vmax.f32 %v805, %v809
    %v822 = vmax.f32 %v806, %v810
    %v823 = vmax.f32 %v807, %v811
    %v824 = vmax.f32 %v808, %v812
    %v825 = vmax.f32 %v821, %v813
    %v826 = vmax.f32 %v822, %v814
    %v827 = vmax.f32 %v823, %v815
    %v828 = vmax.f32 %v824, %v816
    %v829 = vmax.f32 %v825, %v817
    %v830 = vmax.f32 %v826, %v818
    %v831 = vmax.f32 %v827, %v819
    %v832 = vmax.f32 %v828, %v820
    %v833 = vmax.f32 %v829, %v830
    %v834 = vmax.f32 %v831, %v832
    %v835 = vmax.f32 %v833, %v834
    %v836 = vrot.slane %v835, 4
    %v837 = vmax.f32 %v835, %v836
    %v838 = vrot.slane %v837, 2
    %v839 = vmax.f32 %v837, %v838
    %v840 = vrot.slane %v839, 1
    %v841 = vmax.f32 %v839, %v840
    %v842 = vsub.f32 %v805, %v841
    %v843 = vsub.f32 %v806, %v841
    %v844 = vsub.f32 %v807, %v841
    %v845 = vsub.f32 %v808, %v841
    %v846 = vsub.f32 %v809, %v841
    %v847 = vsub.f32 %v810, %v841
    %v848 = vsub.f32 %v811, %v841
    %v849 = vsub.f32 %v812, %v841
    %v850 = vsub.f32 %v813, %v841
    %v851 = vsub.f32 %v814, %v841
    %v852 = vsub.f32 %v815, %v841
    %v853 = vsub.f32 %v816, %v841
    %v854 = vsub.f32 %v817, %v841
    %v855 = vsub.f32 %v818, %v841
    %v856 = vsub.f32 %v819, %v841
    %v857 = vsub.f32 %v820, %v841
    %v858 = vmul.f32 %v842, 1.442695
    %v859 = vpow.pop %v858
    %v860 = vmul.f32 %v843, 1.442695
    %v861 = vpow.pop %v860
    %v862 = vmul.f32 %v844, 1.442695
    %v863 = vpow.pop %v862
    %v864 = vmul.f32 %v845, 1.442695
    %v865 = vpow.pop %v864
    %v866 = vmul.f32 %v846, 1.442695
    %v867 = vpow.pop %v866
    %v868 = vmul.f32 %v847, 1.442695
    %v869 = vpow.pop %v868
    %v870 = vmul.f32 %v848, 1.442695
    %v871 = vpow.pop %v870
    %v872 = vmul.f32 %v849, 1.442695
    %v873 = vpow.pop %v872
    %v874 = vmul.f32 %v850, 1.442695
    %v875 = vpow.pop %v874
    %v876 = vmul.f32 %v851, 1.442695
    %v877 = vpow.pop %v876
    %v878 = vmul.f32 %v852, 1.442695
    %v879 = vpow.pop %v878
    %v880 = vmul.f32 %v853, 1.442695
    %v881 = vpow.pop %v880
    %v882 = vmul.f32 %v854, 1.442695
    %v883 = vpow.pop %v882
    %v884 = vmul.f32 %v855, 1.442695
    %v885 = vpow.pop %v884
    %v886 = vmul.f32 %v856, 1.442695
    %v887 = vpow.pop %v886
    %v888 = vmul.f32 %v857, 1.442695
    %v889 = vpow.pop %v888
    %v890 = vadd.f32 %v859, %v861
    %v891 = vadd.f32 %v890, %v863
    %v892 = vadd.f32 %v891, %v865
    %v893 = vadd.f32 %v892, %v867
    %v894 = vadd.f32 %v893, %v869
    %v895 = vadd.f32 %v894, %v871
    %v896 = vadd.f32 %v895, %v873
    %v897 = vadd.f32 %v896, %v875
    %v898 = vadd.f32 %v897, %v877
    %v899 = vadd.f32 %v898, %v879
    %v900 = vadd.f32 %v899, %v881
    %v901 = vadd.f32 %v900, %v883
    %v902 = vadd.f32 %v901, %v885
    %v903 = vadd.f32 %v902, %v887
    %v904 = vadd.f32 %v903, %v889
    %v905 = vrot.slane %v904, 4
    %v906 = vadd.f32 %v904, %v905
    %v907 = vrot.slane %v906, 2
    %v908 = vadd.f32 %v906, %v907
    %v909 = vrot.slane %v908, 1
    %v910 = vadd.f32 %v908, %v909
    %v911 = vperm.slane %v771, 0
    %vm912 = vcmp.eq.s32.totalorder %v773, %v911
    %vm913 = vcmp.eq.s32.totalorder %v774, %v911
    %vm914 = vcmp.eq.s32.totalorder %v775, %v911
    %vm915 = vcmp.eq.s32.totalorder %v776, %v911
    %vm916 = vcmp.eq.s32.totalorder %v777, %v911
    %vm917 = vcmp.eq.s32.totalorder %v778, %v911
    %vm918 = vcmp.eq.s32.totalorder %v779, %v911
    %vm919 = vcmp.eq.s32.totalorder %v780, %v911
    %vm920 = vcmp.eq.s32.totalorder %v781, %v911
    %vm921 = vcmp.eq.s32.totalorder %v782, %v911
    %vm922 = vcmp.eq.s32.totalorder %v783, %v911
    %vm923 = vcmp.eq.s32.totalorder %v784, %v911
    %vm924 = vcmp.eq.s32.totalorder %v785, %v911
    %vm925 = vcmp.eq.s32.totalorder %v786, %v911
    %vm926 = vcmp.eq.s32.totalorder %v787, %v911
    %vm927 = vcmp.eq.s32.totalorder %v788, %v911
    %v928 = vsel %vm912, %v805, 0.0
    %v929 = vsel %vm913, %v806, 0.0
    %v930 = vsel %vm914, %v807, 0.0
    %v931 = vsel %vm915, %v808, 0.0
    %v932 = vsel %vm916, %v809, 0.0
    %v933 = vsel %vm917, %v810, 0.0
    %v934 = vsel %vm918, %v811, 0.0
    %v935 = vsel %vm919, %v812, 0.0
    %v936 = vsel %vm920, %v813, 0.0
    %v937 = vsel %vm921, %v814, 0.0
    %v938 = vsel %vm922, %v815, 0.0
    %v939 = vsel %vm923, %v816, 0.0
    %v940 = vsel %vm924, %v817, 0.0
    %v941 = vsel %vm925, %v818, 0.0
    %v942 = vsel %vm926, %v819, 0.0
    %v943 = vsel %vm927, %v820, 0.0
    %v944 = vadd.f32 %v928, %v929
    %v945 = vadd.f32 %v944, %v930
    %v946 = vadd.f32 %v945, %v931
    %v947 = vadd.f32 %v946, %v932
    %v948 = vadd.f32 %v947, %v933
    %v949 = vadd.f32 %v948, %v934
    %v950 = vadd.f32 %v949, %v935
    %v951 = vadd.f32 %v950, %v936
    %v952 = vadd.f32 %v951, %v937
    %v953 = vadd.f32 %v952, %v938
    %v954 = vadd.f32 %v953, %v939
    %v955 = vadd.f32 %v954, %v940
    %v956 = vadd.f32 %v955, %v941
    %v957 = vadd.f32 %v956, %v942
    %v958 = vadd.f32 %v957, %v943
    %v959 = vrot.slane %v958, 4
    %v960 = vadd.f32 %v958, %v959
    %v961 = vrot.slane %v960, 2
    %v962 = vadd.f32 %v960, %v961
    %v963 = vrot.slane %v962, 1
    %v964 = vadd.f32 %v962, %v963
    %v965 = vsub.f32 %v964, %v841
    %v966 = vlog2.pop %v910
    %v967 = vmul.f32 %v966, 0.6931472
    %v968 = vsub.f32 %v965, %v967
    %v969 = vld [vmem:[#allocation2] sm:$0x1]
    %v970 = vadd.f32 %v969, %v968
    %971 = vst [vmem:[#allocation14] sm:$0x1] %v970
    // Predicated region
    $region46: #{tpu_custom_call.1} parent=1 // pred_check
      _
    $region47: #{tpu_custom_call.1} parent=1 // pred_check_branch
      %973 = sbr.rel (0) target = $region49
    $region48: #{tpu_custom_call.1} parent=1 // pred_region
      %975 = vsyncadd [#allocation8], 0
      %s977 = sshll.u32 [#allocation14], 4
      %s978 = int_to_ptr.vmem [resolvable:$true] %s977
      %s979 = sshll.u32 %s6, 4
      %s980 = int_to_ptr.hbm [resolvable:$true] %s979
      %982 = dma.vmem_to_hbm [thread:$0]  %s978, 16, %s980, [#allocation8]
    $region49: #{tpu_custom_call.1} parent=1 // pred_fallthru
      _
    // Predicated region
    $region50: #{tpu_custom_call.1} parent=1 // pred_check
      _
    $region51: #{tpu_custom_call.1} parent=1 // pred_check_branch
      %984 = sbr.rel (0) target = $region53
    $region52: #{tpu_custom_call.1} parent=1 // pred_region
      %986 = dma.done [#allocation8], 16
    $region53: #{tpu_custom_call.1} parent=1 // pred_fallthru
      _
    %987 = vsyncpa [#allocation7], 1
    %988 = vsyncpa [#allocation10], 1
    %989 = vsyncpa [#allocation13], 1
    %990 = vsyncpa [#allocation8], 1

</llo_original>
